<compile_context>
chip_gen: v6e
topology: v6e:2x2x1
jax: 0.10.0
libtpu: 0.0.40
codegen_flags: <defaults>
</compile_context>

<pallas_src>
import math

import jax
import jax.numpy as jnp
from jax.experimental import pallas as pl
from jax.experimental.pallas import tpu as pltpu


def _tpu_vmem_capacity_bytes() -> int:
    """Physical VMEM per core; conservative (v7x-sized) fallback if unqueryable."""
    try:
        return int(pltpu.get_tpu_info().vmem_capacity_bytes)
    except Exception:
        return 64 * 1024 * 1024


def _pick_seq_tile(s: int, target: int) -> int:
    """Largest tile <= target that divides s and is a multiple of 8, else s itself."""
    if s <= target:
        return s
    t = (target // 8) * 8
    while t >= 8:
        if s % t == 0:
            return t
        t -= 8
    if s > 2048:
        raise ValueError(
            f"sequence length {s} has no multiple-of-8 tile divisor <= {target}; "
            "pad the sequence to a friendlier length")
    return s


# --------------------------- Kernel 1: fused QKV projection ---------------------------

def _qkv_proj_kernel(q_ref, k_ref, v_ref,
                     wq_ref, bq_ref, wk_ref, bk_ref, wv_ref, bv_ref,
                     qh_ref, kh_ref, vh_ref):
    # One (1, TS, D) activation tile per grid step.  Weight/bias index_maps are
    # constant, so they stay VMEM-resident across the grid (single-buffered when
    # supported).  The 1/sqrt(d_k) scale is already folded into wq/bq.
    def project_and_split(x, w_ref, b_ref, out_ref):
        # Lane-dense (TS, D) @ (D, D) MXU matmul, f32 accumulation.
        y = (jnp.dot(x, w_ref[...], preferred_element_type=jnp.float32)
             + b_ref[...].astype(jnp.float32)).astype(out_ref.dtype)      # (TS, D)
        n_heads = out_ref.shape[1]
        d_k = out_ref.shape[3]
        # split_heads: (TS, D) -> (H, TS, d_k).  Static lane slices + leading-dim
        # stack (pure layout, hides under the MXU); writing the head-split layout
        # here removes the XLA transpose / HBM round trip between the kernels.
        out_ref[0] = jnp.stack(
            [y[:, h * d_k:(h + 1) * d_k] for h in range(n_heads)], axis=0)

    project_and_split(q_ref[0], wq_ref, bq_ref, qh_ref)
    project_and_split(k_ref[0], wk_ref, bk_ref, kh_ref)
    project_and_split(v_ref[0], wv_ref, bv_ref, vh_ref)


# ---------------- Kernel 2: flash attention + fused output projection ----------------

def _flash_attention_kernel(q_ref, k_ref, v_ref, wo_ref, bo_ref, o_ref,
                            m_sc, l_sc, acc_sc):
    # q_ref : (1, H, TQ, d_k)  -- already scaled by 1/sqrt(d_k)
    # k_ref : (1, H, TK, d_k)
    # v_ref : (1, H, TK, d_k)
    # wo_ref: (D, D), bo_ref: (1, D)   -- VMEM-resident, constant index_maps
    # o_ref : (1, TQ, D)               -- written only at the last K/V step
    # scratch: m_sc (H,TQ,1) f32, l_sc (H,TQ,1) f32, acc_sc (H,TQ,d_k) f32
    kv = pl.program_id(2)

    @pl.when(kv == 0)
    def _init():
        m_sc[...] = jnp.full_like(m_sc, -jnp.inf)
        l_sc[...] = jnp.zeros_like(l_sc)
        acc_sc[...] = jnp.zeros_like(acc_sc)

    q = q_ref[0]                                          # (H, TQ, d_k)
    k = k_ref[0]                                          # (H, TK, d_k)
    v = v_ref[0]                                          # (H, TK, d_k)

    # Head-batched score matmul; contraction directly on d_k (no explicit .T).
    s = jnp.einsum("hqd,hkd->hqk", q, k,
                   preferred_element_type=jnp.float32)    # (H, TQ, TK) f32

    # Online (flash) softmax update, all running stats in f32.
    m_prev = m_sc[...]
    m_new = jnp.maximum(m_prev, jnp.max(s, axis=-1, keepdims=True))
    alpha = jnp.exp(m_prev - m_new)                       # rescale factor (H, TQ, 1)
    p = jnp.exp(s - m_new)                                # (H, TQ, TK) f32
    l_sc[...] = alpha * l_sc[...] + jnp.sum(p, axis=-1, keepdims=True)
    acc_sc[...] = alpha * acc_sc[...] + jnp.einsum(
        "hqk,hkd->hqd", p.astype(v.dtype), v, preferred_element_type=jnp.float32)
    m_sc[...] = m_new

    @pl.when(kv == pl.num_programs(2) - 1)
    def _finalize():
        # Exact divide (runs once per query tile, not per K/V step).
        ctx = acc_sc[...] / l_sc[...]                     # (H, TQ, d_k) f32
        n_heads = ctx.shape[0]
        # combine_heads: (H, TQ, d_k) -> (TQ, H*d_k) = (TQ, D) via lane concat
        # (layout only), then ONE lane-dense (TQ, D) @ (D, D) MXU matmul for W_o
        # instead of H short-d_k contractions + an (H, TQ, D) intermediate.
        ctx2d = jnp.concatenate([ctx[h] for h in range(n_heads)], axis=-1)
        out = (jnp.dot(ctx2d.astype(wo_ref.dtype), wo_ref[...],
                       preferred_element_type=jnp.float32)
               + bo_ref[...].astype(jnp.float32))
        o_ref[0] = out.astype(o_ref.dtype)


# ------------------------------------- Wrapper -------------------------------------

def _mha_pallas(q, k, v, wq, bq, wk, bk, wv, bv, wo, bo, *,
                num_heads, seq_tile, q_tile, kv_tile, out_dtype,
                vmem_limit, single_buffer_weights):
    B, S, D = q.shape
    H = num_heads
    d_k = D // H
    cdtype = q.dtype
    c_item = jnp.dtype(cdtype).itemsize

    def const_spec(shape, index_map):
        # Constant-index weight/bias specs: a second pipeline buffer is pure waste.
        if single_buffer_weights:
            return pl.BlockSpec(shape, index_map, pipeline_mode=pl.Buffered(1))
        return pl.BlockSpec(shape, index_map)

    # ---------------- Kernel 1: fused Q/K/V projections -> (B, H, S, d_k) ----------------
    TS = _pick_seq_tile(S, seq_tile)
    act_spec = pl.BlockSpec((1, TS, D), lambda b, s: (b, s, 0))
    w_spec = const_spec((D, D), lambda b, s: (0, 0))
    b_spec = const_spec((1, D), lambda b, s: (0, 0))
    head_out_spec = pl.BlockSpec((1, H, TS, d_k), lambda b, s: (b, 0, s, 0))

    proj_cost = pl.CostEstimate(
        flops=int(2 * 3 * B * S * D * D),
        transcendentals=0,
        bytes_accessed=int((6 * B * S * D + 3 * D * D + 3 * D) * c_item))

    qh, kh, vh = pl.pallas_call(
        _qkv_proj_kernel,
        out_shape=(jax.ShapeDtypeStruct((B, H, S, d_k), cdtype),) * 3,
        grid_spec=pltpu.PrefetchScalarGridSpec(
            num_scalar_prefetch=0,
            grid=(B, S // TS),
            in_specs=[act_spec, act_spec, act_spec,
                      w_spec, b_spec, w_spec, b_spec, w_spec, b_spec],
            out_specs=(head_out_spec, head_out_spec, head_out_spec)),
        compiler_params=pltpu.CompilerParams(
            dimension_semantics=("parallel", "parallel"),
            vmem_limit_bytes=vmem_limit),
        cost_estimate=proj_cost,
    )(q, k, v, wq, bq, wk, bk, wv, bv)

    # -------- Kernel 2: flash attention (kv axis innermost) + output projection --------
    TQ = _pick_seq_tile(S, q_tile)
    TK = _pick_seq_tile(S, kv_tile)
    nq, nk = S // TQ, S // TK

    q_spec = pl.BlockSpec((1, H, TQ, d_k), lambda b, qi, ki: (b, 0, qi, 0))
    kv_spec = pl.BlockSpec((1, H, TK, d_k), lambda b, qi, ki: (b, 0, ki, 0))
    wo_spec = const_spec((D, D), lambda b, qi, ki: (0, 0))
    bo_spec = const_spec((1, D), lambda b, qi, ki: (0, 0))
    out_spec = pl.BlockSpec((1, TQ, D), lambda b, qi, ki: (b, qi, 0))

    attn_cost = pl.CostEstimate(
        flops=int(4 * B * H * S * S * d_k + 2 * B * S * D * D),
        transcendentals=int(B * H * S * S),
        bytes_accessed=int((B * S * D * (1 + 2 * nq) + D * D + D) * c_item
                           + B * S * D * jnp.dtype(out_dtype).itemsize))

    out = pl.pallas_call(
        _flash_attention_kernel,
        out_shape=jax.ShapeDtypeStruct((B, S, D), out_dtype),
        grid_spec=pltpu.PrefetchScalarGridSpec(
            num_scalar_prefetch=0,
            grid=(B, nq, nk),
            in_specs=[q_spec, kv_spec, kv_spec, wo_spec, bo_spec],
            out_specs=out_spec,
            scratch_shapes=[
                pltpu.VMEM((H, TQ, 1), jnp.float32),     # running max
                pltpu.VMEM((H, TQ, 1), jnp.float32),     # running denom
                pltpu.VMEM((H, TQ, d_k), jnp.float32),   # unnormalized context
            ]),
        compiler_params=pltpu.CompilerParams(
            dimension_semantics=("parallel", "parallel", "arbitrary"),
            vmem_limit_bytes=vmem_limit),
        cost_estimate=attn_cost,
    )(qh, kh, vh, wo, bo)

    return out


def multi_head_attention(q, k, v, params, *, num_heads: int,
                         seq_tile: int | None = None, q_tile: int = 256,
                         kv_tile: int = 256, compute_dtype=None):
    """q, k, v: (B, S, D). params: dict of (D,D) weights / (D,) biases. Returns (B,S,D).

    compute_dtype: dtype of all MXU operands (e.g. jnp.bfloat16 on v6e/v7x); softmax
    math and accumulators stay f32.  Defaults to the input dtype.
    """
    B, S, D = q.shape
    H = num_heads
    assert D % H == 0, "d_model must be divisible by num_heads"
    d_k = D // H
    out_dtype = q.dtype
    cdtype = jnp.dtype(compute_dtype) if compute_dtype is not None else jnp.dtype(q.dtype)

    # Generation-aware VMEM budget & projection tile: ~48 MiB / TS=256 on v7x (64 MiB
    # VMEM), up to ~96-100 MiB / TS=512 on v5e/v6e (128 MiB VMEM).
    vmem_cap = _tpu_vmem_capacity_bytes()
    vmem_limit = max(32 * 1024 * 1024,
                     min(int(vmem_cap * 0.75), 100 * 1024 * 1024))
    if seq_tile is None:
        seq_tile = 512 if vmem_cap >= 96 * 1024 * 1024 else 256

    # Fold the 1/sqrt(d_k) attention scale into the Q projection (one-time, in XLA),
    # and cast all MXU operands to the compute dtype.
    scale = 1.0 / math.sqrt(d_k)
    cast = lambda a: a.astype(cdtype)
    wq = cast(params["wq"] * scale)
    bq = cast((params["bq"] * scale).reshape(1, D))
    wk = cast(params["wk"])
    bk = cast(params["bk"].reshape(1, D))
    wv = cast(params["wv"])
    bv = cast(params["bv"].reshape(1, D))
    wo = cast(params["wo"])
    bo = cast(params["bo"].reshape(1, D))
    qx, kx, vx = cast(q), cast(k), cast(v)

    def call(single_buffer_weights):
        return _mha_pallas(qx, kx, vx, wq, bq, wk, bk, wv, bv, wo, bo,
                           num_heads=H, seq_tile=seq_tile, q_tile=q_tile,
                           kv_tile=kv_tile, out_dtype=out_dtype,
                           vmem_limit=vmem_limit,
                           single_buffer_weights=single_buffer_weights)

    try:
        return call(True)
    except Exception:
        # pl.Buffered(1) (single-buffered constant-index weight specs) is not
        # supported on every jax version; retry with default double buffering.
        return call(False)


# ------------------------------------ Reference ------------------------------------

def _reference(q, k, v, params, *, num_heads: int):
    """Pure-JAX reference mirroring the PyTorch forward exactly."""
    B, S, D = q.shape
    d_k = D // num_heads

    def lin(x, w, b):
        return x @ w + b

    def split_heads(x):
        return x.reshape(B, S, num_heads, d_k).transpose(0, 2, 1, 3)  # (B,H,S,d_k)

    Q = split_heads(lin(q, params["wq"], params["bq"]))
    K = split_heads(lin(k, params["wk"], params["bk"]))
    V = split_heads(lin(v, params["wv"], params["bv"]))

    scores = jnp.einsum("bhqd,bhkd->bhqk", Q, K) / math.sqrt(d_k)
    probs = jax.nn.softmax(scores, axis=-1)
    ctx = jnp.einsum("bhqk,bhkd->bhqd", probs, V)
    ctx = ctx.transpose(0, 2, 1, 3).reshape(B, S, D)
    return lin(ctx, params["wo"], params["bo"])


if __name__ == "__main__":
    B, S, D, H = 2, 8, 32, 4  # batch, seq, d_model, num_heads

    key = jax.random.PRNGKey(0)
    keys = jax.random.split(key, 11)

    wscale = 1.0 / math.sqrt(D)
    params = {
        "wq": jax.random.normal(keys[0], (D, D), jnp.float32) * wscale,
        "bq": jax.random.normal(keys[1], (D,), jnp.float32) * 0.01,
        "wk": jax.random.normal(keys[2], (D, D), jnp.float32) * wscale,
        "bk": jax.random.normal(keys[3], (D,), jnp.float32) * 0.01,
        "wv": jax.random.normal(keys[4], (D, D), jnp.float32) * wscale,
        "bv": jax.random.normal(keys[5], (D,), jnp.float32) * 0.01,
        "wo": jax.random.normal(keys[6], (D, D), jnp.float32) * wscale,
        "bo": jax.random.normal(keys[7], (D,), jnp.float32) * 0.01,
    }

    q = jax.random.normal(keys[8], (B, S, D), jnp.float32)
    k = jax.random.normal(keys[9], (B, S, D), jnp.float32)
    v = jax.random.normal(keys[10], (B, S, D), jnp.float32)

    ref = _reference(q, k, v, params, num_heads=H)

    # f32 compute path (matches the PyTorch module's default precision path).
    out = multi_head_attention(q, k, v, params, num_heads=H)
    out = jax.block_until_ready(out)
    assert out.shape == (B, S, D)
    # Tolerance accounts for TPU default-precision MXU passes and the fused scale.
    assert jnp.allclose(out, ref, atol=2e-3, rtol=2e-3), "Pallas f32 output mismatch"

    # bf16 MXU-operand path (review: cast MXU operands to bf16, keep softmax in f32).
    out_bf16 = multi_head_attention(q, k, v, params, num_heads=H,
                                    compute_dtype=jnp.bfloat16)
    out_bf16 = jax.block_until_ready(out_bf16)
    assert out_bf16.shape == (B, S, D)
    assert bool(jnp.all(jnp.isfinite(out_bf16)))
    assert jnp.allclose(out_bf16, ref, atol=0.15, rtol=0.15), "Pallas bf16 output mismatch"

    print("KERNEL_OK")
</pallas_src>

<mosaic_0001>
module attributes {stable_mosaic.version = 11 : i64} {
  func.func @_qkv_proj_kernel(%arg0: i32, %arg1: i32, %arg2: memref<1x8x32xf32, #tpu.memory_space<vmem>>, %arg3: memref<1x8x32xf32, #tpu.memory_space<vmem>>, %arg4: memref<1x8x32xf32, #tpu.memory_space<vmem>>, %arg5: memref<32x32xf32, #tpu.memory_space<vmem>>, %arg6: memref<1x32xf32, #tpu.memory_space<vmem>>, %arg7: memref<32x32xf32, #tpu.memory_space<vmem>>, %arg8: memref<1x32xf32, #tpu.memory_space<vmem>>, %arg9: memref<32x32xf32, #tpu.memory_space<vmem>>, %arg10: memref<1x32xf32, #tpu.memory_space<vmem>>, %arg11: memref<1x4x8x8xf32, #tpu.memory_space<vmem>>, %arg12: memref<1x4x8x8xf32, #tpu.memory_space<vmem>>, %arg13: memref<1x4x8x8xf32, #tpu.memory_space<vmem>>) attributes {dimension_semantics = [#tpu.dimension_semantics<parallel>, #tpu.dimension_semantics<parallel>], iteration_bounds = array<i64: 2, 1>, scalar_prefetch = 0 : i64, scratch_operands = 0 : i64, tpu.core_type = #tpu.core_type<tc>, window_params = [{transform_indices = @transform_0, window_bounds = array<i64: 1, 8, 32>}, {transform_indices = @transform_1, window_bounds = array<i64: 1, 8, 32>}, {transform_indices = @transform_2, window_bounds = array<i64: 1, 8, 32>}, {pipeline_mode = #tpu.pipeline_mode<synchronous>, transform_indices = @transform_3, window_bounds = array<i64: 32, 32>}, {pipeline_mode = #tpu.pipeline_mode<synchronous>, transform_indices = @transform_4, window_bounds = array<i64: 1, 32>}, {pipeline_mode = #tpu.pipeline_mode<synchronous>, transform_indices = @transform_5, window_bounds = array<i64: 32, 32>}, {pipeline_mode = #tpu.pipeline_mode<synchronous>, transform_indices = @transform_6, window_bounds = array<i64: 1, 32>}, {pipeline_mode = #tpu.pipeline_mode<synchronous>, transform_indices = @transform_7, window_bounds = array<i64: 32, 32>}, {pipeline_mode = #tpu.pipeline_mode<synchronous>, transform_indices = @transform_8, window_bounds = array<i64: 1, 32>}, {transform_indices = @transform_9, window_bounds = array<i64: 1, 4, 8, 8>}, {transform_indices = @transform_10, window_bounds = array<i64: 1, 4, 8, 8>}, {transform_indices = @transform_11, window_bounds = array<i64: 1, 4, 8, 8>}]} {
    %c0 = arith.constant 0 : index
    %c0_0 = arith.constant 0 : index
    %c0_1 = arith.constant 0 : index
    %0 = vector.load %arg2[%c0, %c0_0, %c0_1] : memref<1x8x32xf32, #tpu.memory_space<vmem>>, vector<1x8x32xf32>
    %1 = vector.shape_cast %0 : vector<1x8x32xf32> to vector<8x32xf32>
    %c0_2 = arith.constant 0 : index
    %c0_3 = arith.constant 0 : index
    %2 = vector.load %arg5[%c0_2, %c0_3] : memref<32x32xf32, #tpu.memory_space<vmem>>, vector<32x32xf32>
    %cst = arith.constant dense<0.000000e+00> : vector<8x32xf32>
    %3 = tpu.matmul %1, %2, %cst {dimension_numbers = #tpu.dot_dimension_numbers<[1], [0], [0], [1], [0, 0, 1, 1], [], []>} : vector<8x32xf32>, vector<32x32xf32>, vector<8x32xf32> -> vector<8x32xf32>
    %c0_4 = arith.constant 0 : index
    %c0_5 = arith.constant 0 : index
    %4 = vector.load %arg6[%c0_4, %c0_5] : memref<1x32xf32, #tpu.memory_space<vmem>>, vector<1x32xf32>
    %5 = vector.broadcast %4 : vector<1x32xf32> to vector<8x32xf32>
    %6 = arith.addf %3, %5 : vector<8x32xf32>
    %7 = vector.extract_strided_slice %6 {offsets = [0, 0], sizes = [8, 8], strides = [1, 1]} : vector<8x32xf32> to vector<8x8xf32>
    %8 = vector.extract_strided_slice %6 {offsets = [0, 8], sizes = [8, 8], strides = [1, 1]} : vector<8x32xf32> to vector<8x8xf32>
    %9 = vector.extract_strided_slice %6 {offsets = [0, 16], sizes = [8, 8], strides = [1, 1]} : vector<8x32xf32> to vector<8x8xf32>
    %10 = vector.extract_strided_slice %6 {offsets = [0, 24], sizes = [8, 8], strides = [1, 1]} : vector<8x32xf32> to vector<8x8xf32>
    %11 = vector.shape_cast %7 : vector<8x8xf32> to vector<1x8x8xf32>
    %12 = vector.shape_cast %8 : vector<8x8xf32> to vector<1x8x8xf32>
    %13 = vector.shape_cast %9 : vector<8x8xf32> to vector<1x8x8xf32>
    %14 = vector.shape_cast %10 : vector<8x8xf32> to vector<1x8x8xf32>
    %15 = tpu.concatenate %11, %12, %13, %14 in 0 : vector<1x8x8xf32>, vector<1x8x8xf32>, vector<1x8x8xf32>, vector<1x8x8xf32> -> vector<4x8x8xf32>
    %c0_6 = arith.constant 0 : index
    %c0_7 = arith.constant 0 : index
    %c0_8 = arith.constant 0 : index
    %c0_9 = arith.constant 0 : index
    %16 = vector.load %arg11[%c0_6, %c0_7, %c0_8, %c0_9] : memref<1x4x8x8xf32, #tpu.memory_space<vmem>>, vector<1x4x8x8xf32>
    %17 = vector.shape_cast %16 : vector<1x4x8x8xf32> to vector<4x8x8xf32>
    %18 = vector.shape_cast %15 : vector<4x8x8xf32> to vector<1x4x8x8xf32>
    tpu.vector_store %arg11[%c0_6, %c0_7, %c0_8, %c0_9], %18 {strides = array<i32>} : memref<1x4x8x8xf32, #tpu.memory_space<vmem>>, vector<1x4x8x8xf32>,
    %c0_10 = arith.constant 0 : index
    %c0_11 = arith.constant 0 : index
    %c0_12 = arith.constant 0 : index
    %19 = vector.load %arg3[%c0_10, %c0_11, %c0_12] : memref<1x8x32xf32, #tpu.memory_space<vmem>>, vector<1x8x32xf32>
    %20 = vector.shape_cast %19 : vector<1x8x32xf32> to vector<8x32xf32>
    %c0_13 = arith.constant 0 : index
    %c0_14 = arith.constant 0 : index
    %21 = vector.load %arg7[%c0_13, %c0_14] : memref<32x32xf32, #tpu.memory_space<vmem>>, vector<32x32xf32>
    %cst_15 = arith.constant dense<0.000000e+00> : vector<8x32xf32>
    %22 = tpu.matmul %20, %21, %cst_15 {dimension_numbers = #tpu.dot_dimension_numbers<[1], [0], [0], [1], [0, 0, 1, 1], [], []>} : vector<8x32xf32>, vector<32x32xf32>, vector<8x32xf32> -> vector<8x32xf32>
    %c0_16 = arith.constant 0 : index
    %c0_17 = arith.constant 0 : index
    %23 = vector.load %arg8[%c0_16, %c0_17] : memref<1x32xf32, #tpu.memory_space<vmem>>, vector<1x32xf32>
    %24 = vector.broadcast %23 : vector<1x32xf32> to vector<8x32xf32>
    %25 = arith.addf %22, %24 : vector<8x32xf32>
    %26 = vector.extract_strided_slice %25 {offsets = [0, 0], sizes = [8, 8], strides = [1, 1]} : vector<8x32xf32> to vector<8x8xf32>
    %27 = vector.extract_strided_slice %25 {offsets = [0, 8], sizes = [8, 8], strides = [1, 1]} : vector<8x32xf32> to vector<8x8xf32>
    %28 = vector.extract_strided_slice %25 {offsets = [0, 16], sizes = [8, 8], strides = [1, 1]} : vector<8x32xf32> to vector<8x8xf32>
    %29 = vector.extract_strided_slice %25 {offsets = [0, 24], sizes = [8, 8], strides = [1, 1]} : vector<8x32xf32> to vector<8x8xf32>
    %30 = vector.shape_cast %26 : vector<8x8xf32> to vector<1x8x8xf32>
    %31 = vector.shape_cast %27 : vector<8x8xf32> to vector<1x8x8xf32>
    %32 = vector.shape_cast %28 : vector<8x8xf32> to vector<1x8x8xf32>
    %33 = vector.shape_cast %29 : vector<8x8xf32> to vector<1x8x8xf32>
    %34 = tpu.concatenate %30, %31, %32, %33 in 0 : vector<1x8x8xf32>, vector<1x8x8xf32>, vector<1x8x8xf32>, vector<1x8x8xf32> -> vector<4x8x8xf32>
    %c0_18 = arith.constant 0 : index
    %c0_19 = arith.constant 0 : index
    %c0_20 = arith.constant 0 : index
    %c0_21 = arith.constant 0 : index
    %35 = vector.load %arg12[%c0_18, %c0_19, %c0_20, %c0_21] : memref<1x4x8x8xf32, #tpu.memory_space<vmem>>, vector<1x4x8x8xf32>
    %36 = vector.shape_cast %35 : vector<1x4x8x8xf32> to vector<4x8x8xf32>
    %37 = vector.shape_cast %34 : vector<4x8x8xf32> to vector<1x4x8x8xf32>
    tpu.vector_store %arg12[%c0_18, %c0_19, %c0_20, %c0_21], %37 {strides = array<i32>} : memref<1x4x8x8xf32, #tpu.memory_space<vmem>>, vector<1x4x8x8xf32>,
    %c0_22 = arith.constant 0 : index
    %c0_23 = arith.constant 0 : index
    %c0_24 = arith.constant 0 : index
    %38 = vector.load %arg4[%c0_22, %c0_23, %c0_24] : memref<1x8x32xf32, #tpu.memory_space<vmem>>, vector<1x8x32xf32>
    %39 = vector.shape_cast %38 : vector<1x8x32xf32> to vector<8x32xf32>
    %c0_25 = arith.constant 0 : index
    %c0_26 = arith.constant 0 : index
    %40 = vector.load %arg9[%c0_25, %c0_26] : memref<32x32xf32, #tpu.memory_space<vmem>>, vector<32x32xf32>
    %cst_27 = arith.constant dense<0.000000e+00> : vector<8x32xf32>
    %41 = tpu.matmul %39, %40, %cst_27 {dimension_numbers = #tpu.dot_dimension_numbers<[1], [0], [0], [1], [0, 0, 1, 1], [], []>} : vector<8x32xf32>, vector<32x32xf32>, vector<8x32xf32> -> vector<8x32xf32>
    %c0_28 = arith.constant 0 : index
    %c0_29 = arith.constant 0 : index
    %42 = vector.load %arg10[%c0_28, %c0_29] : memref<1x32xf32, #tpu.memory_space<vmem>>, vector<1x32xf32>
    %43 = vector.broadcast %42 : vector<1x32xf32> to vector<8x32xf32>
    %44 = arith.addf %41, %43 : vector<8x32xf32>
    %45 = vector.extract_strided_slice %44 {offsets = [0, 0], sizes = [8, 8], strides = [1, 1]} : vector<8x32xf32> to vector<8x8xf32>
    %46 = vector.extract_strided_slice %44 {offsets = [0, 8], sizes = [8, 8], strides = [1, 1]} : vector<8x32xf32> to vector<8x8xf32>
    %47 = vector.extract_strided_slice %44 {offsets = [0, 16], sizes = [8, 8], strides = [1, 1]} : vector<8x32xf32> to vector<8x8xf32>
    %48 = vector.extract_strided_slice %44 {offsets = [0, 24], sizes = [8, 8], strides = [1, 1]} : vector<8x32xf32> to vector<8x8xf32>
    %49 = vector.shape_cast %45 : vector<8x8xf32> to vector<1x8x8xf32>
    %50 = vector.shape_cast %46 : vector<8x8xf32> to vector<1x8x8xf32>
    %51 = vector.shape_cast %47 : vector<8x8xf32> to vector<1x8x8xf32>
    %52 = vector.shape_cast %48 : vector<8x8xf32> to vector<1x8x8xf32>
    %53 = tpu.concatenate %49, %50, %51, %52 in 0 : vector<1x8x8xf32>, vector<1x8x8xf32>, vector<1x8x8xf32>, vector<1x8x8xf32> -> vector<4x8x8xf32>
    %c0_30 = arith.constant 0 : index
    %c0_31 = arith.constant 0 : index
    %c0_32 = arith.constant 0 : index
    %c0_33 = arith.constant 0 : index
    %54 = vector.load %arg13[%c0_30, %c0_31, %c0_32, %c0_33] : memref<1x4x8x8xf32, #tpu.memory_space<vmem>>, vector<1x4x8x8xf32>
    %55 = vector.shape_cast %54 : vector<1x4x8x8xf32> to vector<4x8x8xf32>
    %56 = vector.shape_cast %53 : vector<4x8x8xf32> to vector<1x4x8x8xf32>
    tpu.vector_store %arg13[%c0_30, %c0_31, %c0_32, %c0_33], %56 {strides = array<i32>} : memref<1x4x8x8xf32, #tpu.memory_space<vmem>>, vector<1x4x8x8xf32>,
    return
  }
  func.func @transform_0(%arg0: i32, %arg1: i32) -> (i32, i32, i32) {
    %c0_i32 = arith.constant 0 : i32
    %c0_i32_0 = arith.constant 0 : i32
    return %arg0, %arg1, %c0_i32 : i32, i32, i32
  }
  func.func @transform_1(%arg0: i32, %arg1: i32) -> (i32, i32, i32) {
    %c0_i32 = arith.constant 0 : i32
    %c0_i32_0 = arith.constant 0 : i32
    return %arg0, %arg1, %c0_i32 : i32, i32, i32
  }
  func.func @transform_2(%arg0: i32, %arg1: i32) -> (i32, i32, i32) {
    %c0_i32 = arith.constant 0 : i32
    %c0_i32_0 = arith.constant 0 : i32
    return %arg0, %arg1, %c0_i32 : i32, i32, i32
  }
  func.func @transform_3(%arg0: i32, %arg1: i32) -> (i32, i32) {
    %c0_i32 = arith.constant 0 : i32
    %c0_i32_0 = arith.constant 0 : i32
    %c0_i32_1 = arith.constant 0 : i32
    return %c0_i32, %c0_i32_0 : i32, i32
  }
  func.func @transform_4(%arg0: i32, %arg1: i32) -> (i32, i32) {
    %c0_i32 = arith.constant 0 : i32
    %c0_i32_0 = arith.constant 0 : i32
    %c0_i32_1 = arith.constant 0 : i32
    return %c0_i32, %c0_i32_0 : i32, i32
  }
  func.func @transform_5(%arg0: i32, %arg1: i32) -> (i32, i32) {
    %c0_i32 = arith.constant 0 : i32
    %c0_i32_0 = arith.constant 0 : i32
    %c0_i32_1 = arith.constant 0 : i32
    return %c0_i32, %c0_i32_0 : i32, i32
  }
  func.func @transform_6(%arg0: i32, %arg1: i32) -> (i32, i32) {
    %c0_i32 = arith.constant 0 : i32
    %c0_i32_0 = arith.constant 0 : i32
    %c0_i32_1 = arith.constant 0 : i32
    return %c0_i32, %c0_i32_0 : i32, i32
  }
  func.func @transform_7(%arg0: i32, %arg1: i32) -> (i32, i32) {
    %c0_i32 = arith.constant 0 : i32
    %c0_i32_0 = arith.constant 0 : i32
    %c0_i32_1 = arith.constant 0 : i32
    return %c0_i32, %c0_i32_0 : i32, i32
  }
  func.func @transform_8(%arg0: i32, %arg1: i32) -> (i32, i32) {
    %c0_i32 = arith.constant 0 : i32
    %c0_i32_0 = arith.constant 0 : i32
    %c0_i32_1 = arith.constant 0 : i32
    return %c0_i32, %c0_i32_0 : i32, i32
  }
  func.func @transform_9(%arg0: i32, %arg1: i32) -> (i32, i32, i32, i32) {
    %c0_i32 = arith.constant 0 : i32
    %c0_i32_0 = arith.constant 0 : i32
    %c0_i32_1 = arith.constant 0 : i32
    return %arg0, %c0_i32, %arg1, %c0_i32_0 : i32, i32, i32, i32
  }
  func.func @transform_10(%arg0: i32, %arg1: i32) -> (i32, i32, i32, i32) {
    %c0_i32 = arith.constant 0 : i32
    %c0_i32_0 = arith.constant 0 : i32
    %c0_i32_1 = arith.constant 0 : i32
    return %arg0, %c0_i32, %arg1, %c0_i32_0 : i32, i32, i32, i32
  }
  func.func @transform_11(%arg0: i32, %arg1: i32) -> (i32, i32, i32, i32) {
    %c0_i32 = arith.constant 0 : i32
    %c0_i32_0 = arith.constant 0 : i32
    %c0_i32_1 = arith.constant 0 : i32
    return %arg0, %c0_i32, %arg1, %c0_i32_0 : i32, i32, i32, i32
  }
}

module attributes {stable_mosaic.version = 11 : i64} {
  func.func @_qkv_proj_kernel(%arg0: i32, %arg1: i32, %arg2: memref<1x8x32xf32, #tpu.memory_space<vmem>>, %arg3: memref<1x8x32xf32, #tpu.memory_space<vmem>>, %arg4: memref<1x8x32xf32, #tpu.memory_space<vmem>>, %arg5: memref<32x32xf32, #tpu.memory_space<vmem>>, %arg6: memref<1x32xf32, #tpu.memory_space<vmem>>, %arg7: memref<32x32xf32, #tpu.memory_space<vmem>>, %arg8: memref<1x32xf32, #tpu.memory_space<vmem>>, %arg9: memref<32x32xf32, #tpu.memory_space<vmem>>, %arg10: memref<1x32xf32, #tpu.memory_space<vmem>>, %arg11: memref<1x4x8x8xf32, #tpu.memory_space<vmem>>, %arg12: memref<1x4x8x8xf32, #tpu.memory_space<vmem>>, %arg13: memref<1x4x8x8xf32, #tpu.memory_space<vmem>>) attributes {dimension_semantics = [#tpu.dimension_semantics<parallel>, #tpu.dimension_semantics<parallel>], iteration_bounds = array<i64: 2, 1>, scalar_prefetch = 0 : i64, scratch_operands = 0 : i64, tpu.core_type = #tpu.core_type<tc>, window_params = [{transform_indices = @transform_0, window_bounds = array<i64: 1, 8, 32>}, {transform_indices = @transform_1, window_bounds = array<i64: 1, 8, 32>}, {transform_indices = @transform_2, window_bounds = array<i64: 1, 8, 32>}, {pipeline_mode = #tpu.pipeline_mode<synchronous>, transform_indices = @transform_3, window_bounds = array<i64: 32, 32>}, {pipeline_mode = #tpu.pipeline_mode<synchronous>, transform_indices = @transform_4, window_bounds = array<i64: 1, 32>}, {pipeline_mode = #tpu.pipeline_mode<synchronous>, transform_indices = @transform_5, window_bounds = array<i64: 32, 32>}, {pipeline_mode = #tpu.pipeline_mode<synchronous>, transform_indices = @transform_6, window_bounds = array<i64: 1, 32>}, {pipeline_mode = #tpu.pipeline_mode<synchronous>, transform_indices = @transform_7, window_bounds = array<i64: 32, 32>}, {pipeline_mode = #tpu.pipeline_mode<synchronous>, transform_indices = @transform_8, window_bounds = array<i64: 1, 32>}, {transform_indices = @transform_9, window_bounds = array<i64: 1, 4, 8, 8>}, {transform_indices = @transform_10, window_bounds = array<i64: 1, 4, 8, 8>}, {transform_indices = @transform_11, window_bounds = array<i64: 1, 4, 8, 8>}]} {
    %c0 = arith.constant 0 : index
    %c0_0 = arith.constant 0 : index
    %c0_1 = arith.constant 0 : index
    %0 = vector.load %arg2[%c0, %c0_0, %c0_1] : memref<1x8x32xf32, #tpu.memory_space<vmem>>, vector<1x8x32xf32>
    %1 = vector.shape_cast %0 : vector<1x8x32xf32> to vector<8x32xf32>
    %c0_2 = arith.constant 0 : index
    %c0_3 = arith.constant 0 : index
    %2 = vector.load %arg5[%c0_2, %c0_3] : memref<32x32xf32, #tpu.memory_space<vmem>>, vector<32x32xf32>
    %cst = arith.constant dense<0.000000e+00> : vector<8x32xf32>
    %3 = tpu.matmul %1, %2, %cst {dimension_numbers = #tpu.dot_dimension_numbers<[1], [0], [0], [1], [0, 0, 1, 1], [], []>} : vector<8x32xf32>, vector<32x32xf32>, vector<8x32xf32> -> vector<8x32xf32>
    %c0_4 = arith.constant 0 : index
    %c0_5 = arith.constant 0 : index
    %4 = vector.load %arg6[%c0_4, %c0_5] : memref<1x32xf32, #tpu.memory_space<vmem>>, vector<1x32xf32>
    %5 = vector.broadcast %4 : vector<1x32xf32> to vector<8x32xf32>
    %6 = arith.addf %3, %5 : vector<8x32xf32>
    %7 = vector.extract_strided_slice %6 {offsets = [0, 0], sizes = [8, 8], strides = [1, 1]} : vector<8x32xf32> to vector<8x8xf32>
    %8 = vector.extract_strided_slice %6 {offsets = [0, 8], sizes = [8, 8], strides = [1, 1]} : vector<8x32xf32> to vector<8x8xf32>
    %9 = vector.extract_strided_slice %6 {offsets = [0, 16], sizes = [8, 8], strides = [1, 1]} : vector<8x32xf32> to vector<8x8xf32>
    %10 = vector.extract_strided_slice %6 {offsets = [0, 24], sizes = [8, 8], strides = [1, 1]} : vector<8x32xf32> to vector<8x8xf32>
    %11 = vector.shape_cast %7 : vector<8x8xf32> to vector<1x8x8xf32>
    %12 = vector.shape_cast %8 : vector<8x8xf32> to vector<1x8x8xf32>
    %13 = vector.shape_cast %9 : vector<8x8xf32> to vector<1x8x8xf32>
    %14 = vector.shape_cast %10 : vector<8x8xf32> to vector<1x8x8xf32>
    %15 = tpu.concatenate %11, %12, %13, %14 in 0 : vector<1x8x8xf32>, vector<1x8x8xf32>, vector<1x8x8xf32>, vector<1x8x8xf32> -> vector<4x8x8xf32>
    %c0_6 = arith.constant 0 : index
    %c0_7 = arith.constant 0 : index
    %c0_8 = arith.constant 0 : index
    %c0_9 = arith.constant 0 : index
    %16 = vector.load %arg11[%c0_6, %c0_7, %c0_8, %c0_9] : memref<1x4x8x8xf32, #tpu.memory_space<vmem>>, vector<1x4x8x8xf32>
    %17 = vector.shape_cast %16 : vector<1x4x8x8xf32> to vector<4x8x8xf32>
    %18 = vector.shape_cast %15 : vector<4x8x8xf32> to vector<1x4x8x8xf32>
    tpu.vector_store %arg11[%c0_6, %c0_7, %c0_8, %c0_9], %18 {strides = array<i32>} : memref<1x4x8x8xf32, #tpu.memory_space<vmem>>, vector<1x4x8x8xf32>,
    %c0_10 = arith.constant 0 : index
    %c0_11 = arith.constant 0 : index
    %c0_12 = arith.constant 0 : index
    %19 = vector.load %arg3[%c0_10, %c0_11, %c0_12] : memref<1x8x32xf32, #tpu.memory_space<vmem>>, vector<1x8x32xf32>
    %20 = vector.shape_cast %19 : vector<1x8x32xf32> to vector<8x32xf32>
    %c0_13 = arith.constant 0 : index
    %c0_14 = arith.constant 0 : index
    %21 = vector.load %arg7[%c0_13, %c0_14] : memref<32x32xf32, #tpu.memory_space<vmem>>, vector<32x32xf32>
    %cst_15 = arith.constant dense<0.000000e+00> : vector<8x32xf32>
    %22 = tpu.matmul %20, %21, %cst_15 {dimension_numbers = #tpu.dot_dimension_numbers<[1], [0], [0], [1], [0, 0, 1, 1], [], []>} : vector<8x32xf32>, vector<32x32xf32>, vector<8x32xf32> -> vector<8x32xf32>
    %c0_16 = arith.constant 0 : index
    %c0_17 = arith.constant 0 : index
    %23 = vector.load %arg8[%c0_16, %c0_17] : memref<1x32xf32, #tpu.memory_space<vmem>>, vector<1x32xf32>
    %24 = vector.broadcast %23 : vector<1x32xf32> to vector<8x32xf32>
    %25 = arith.addf %22, %24 : vector<8x32xf32>
    %26 = vector.extract_strided_slice %25 {offsets = [0, 0], sizes = [8, 8], strides = [1, 1]} : vector<8x32xf32> to vector<8x8xf32>
    %27 = vector.extract_strided_slice %25 {offsets = [0, 8], sizes = [8, 8], strides = [1, 1]} : vector<8x32xf32> to vector<8x8xf32>
    %28 = vector.extract_strided_slice %25 {offsets = [0, 16], sizes = [8, 8], strides = [1, 1]} : vector<8x32xf32> to vector<8x8xf32>
    %29 = vector.extract_strided_slice %25 {offsets = [0, 24], sizes = [8, 8], strides = [1, 1]} : vector<8x32xf32> to vector<8x8xf32>
    %30 = vector.shape_cast %26 : vector<8x8xf32> to vector<1x8x8xf32>
    %31 = vector.shape_cast %27 : vector<8x8xf32> to vector<1x8x8xf32>
    %32 = vector.shape_cast %28 : vector<8x8xf32> to vector<1x8x8xf32>
    %33 = vector.shape_cast %29 : vector<8x8xf32> to vector<1x8x8xf32>
    %34 = tpu.concatenate %30, %31, %32, %33 in 0 : vector<1x8x8xf32>, vector<1x8x8xf32>, vector<1x8x8xf32>, vector<1x8x8xf32> -> vector<4x8x8xf32>
    %c0_18 = arith.constant 0 : index
    %c0_19 = arith.constant 0 : index
    %c0_20 = arith.constant 0 : index
    %c0_21 = arith.constant 0 : index
    %35 = vector.load %arg12[%c0_18, %c0_19, %c0_20, %c0_21] : memref<1x4x8x8xf32, #tpu.memory_space<vmem>>, vector<1x4x8x8xf32>
    %36 = vector.shape_cast %35 : vector<1x4x8x8xf32> to vector<4x8x8xf32>
    %37 = vector.shape_cast %34 : vector<4x8x8xf32> to vector<1x4x8x8xf32>
    tpu.vector_store %arg12[%c0_18, %c0_19, %c0_20, %c0_21], %37 {strides = array<i32>} : memref<1x4x8x8xf32, #tpu.memory_space<vmem>>, vector<1x4x8x8xf32>,
    %c0_22 = arith.constant 0 : index
    %c0_23 = arith.constant 0 : index
    %c0_24 = arith.constant 0 : index
    %38 = vector.load %arg4[%c0_22, %c0_23, %c0_24] : memref<1x8x32xf32, #tpu.memory_space<vmem>>, vector<1x8x32xf32>
    %39 = vector.shape_cast %38 : vector<1x8x32xf32> to vector<8x32xf32>
    %c0_25 = arith.constant 0 : index
    %c0_26 = arith.constant 0 : index
    %40 = vector.load %arg9[%c0_25, %c0_26] : memref<32x32xf32, #tpu.memory_space<vmem>>, vector<32x32xf32>
    %cst_27 = arith.constant dense<0.000000e+00> : vector<8x32xf32>
    %41 = tpu.matmul %39, %40, %cst_27 {dimension_numbers = #tpu.dot_dimension_numbers<[1], [0], [0], [1], [0, 0, 1, 1], [], []>} : vector<8x32xf32>, vector<32x32xf32>, vector<8x32xf32> -> vector<8x32xf32>
    %c0_28 = arith.constant 0 : index
    %c0_29 = arith.constant 0 : index
    %42 = vector.load %arg10[%c0_28, %c0_29] : memref<1x32xf32, #tpu.memory_space<vmem>>, vector<1x32xf32>
    %43 = vector.broadcast %42 : vector<1x32xf32> to vector<8x32xf32>
    %44 = arith.addf %41, %43 : vector<8x32xf32>
    %45 = vector.extract_strided_slice %44 {offsets = [0, 0], sizes = [8, 8], strides = [1, 1]} : vector<8x32xf32> to vector<8x8xf32>
    %46 = vector.extract_strided_slice %44 {offsets = [0, 8], sizes = [8, 8], strides = [1, 1]} : vector<8x32xf32> to vector<8x8xf32>
    %47 = vector.extract_strided_slice %44 {offsets = [0, 16], sizes = [8, 8], strides = [1, 1]} : vector<8x32xf32> to vector<8x8xf32>
    %48 = vector.extract_strided_slice %44 {offsets = [0, 24], sizes = [8, 8], strides = [1, 1]} : vector<8x32xf32> to vector<8x8xf32>
    %49 = vector.shape_cast %45 : vector<8x8xf32> to vector<1x8x8xf32>
    %50 = vector.shape_cast %46 : vector<8x8xf32> to vector<1x8x8xf32>
    %51 = vector.shape_cast %47 : vector<8x8xf32> to vector<1x8x8xf32>
    %52 = vector.shape_cast %48 : vector<8x8xf32> to vector<1x8x8xf32>
    %53 = tpu.concatenate %49, %50, %51, %52 in 0 : vector<1x8x8xf32>, vector<1x8x8xf32>, vector<1x8x8xf32>, vector<1x8x8xf32> -> vector<4x8x8xf32>
    %c0_30 = arith.constant 0 : index
    %c0_31 = arith.constant 0 : index
    %c0_32 = arith.constant 0 : index
    %c0_33 = arith.constant 0 : index
    %54 = vector.load %arg13[%c0_30, %c0_31, %c0_32, %c0_33] : memref<1x4x8x8xf32, #tpu.memory_space<vmem>>, vector<1x4x8x8xf32>
    %55 = vector.shape_cast %54 : vector<1x4x8x8xf32> to vector<4x8x8xf32>
    %56 = vector.shape_cast %53 : vector<4x8x8xf32> to vector<1x4x8x8xf32>
    tpu.vector_store %arg13[%c0_30, %c0_31, %c0_32, %c0_33], %56 {strides = array<i32>} : memref<1x4x8x8xf32, #tpu.memory_space<vmem>>, vector<1x4x8x8xf32>,
    return
  }
  func.func @transform_0(%arg0: i32, %arg1: i32) -> (i32, i32, i32) {
    %c0_i32 = arith.constant 0 : i32
    %c0_i32_0 = arith.constant 0 : i32
    return %arg0, %arg1, %c0_i32 : i32, i32, i32
  }
  func.func @transform_1(%arg0: i32, %arg1: i32) -> (i32, i32, i32) {
    %c0_i32 = arith.constant 0 : i32
    %c0_i32_0 = arith.constant 0 : i32
    return %arg0, %arg1, %c0_i32 : i32, i32, i32
  }
  func.func @transform_2(%arg0: i32, %arg1: i32) -> (i32, i32, i32) {
    %c0_i32 = arith.constant 0 : i32
    %c0_i32_0 = arith.constant 0 : i32
    return %arg0, %arg1, %c0_i32 : i32, i32, i32
  }
  func.func @transform_3(%arg0: i32, %arg1: i32) -> (i32, i32) {
    %c0_i32 = arith.constant 0 : i32
    %c0_i32_0 = arith.constant 0 : i32
    %c0_i32_1 = arith.constant 0 : i32
    return %c0_i32, %c0_i32_0 : i32, i32
  }
  func.func @transform_4(%arg0: i32, %arg1: i32) -> (i32, i32) {
    %c0_i32 = arith.constant 0 : i32
    %c0_i32_0 = arith.constant 0 : i32
    %c0_i32_1 = arith.constant 0 : i32
    return %c0_i32, %c0_i32_0 : i32, i32
  }
  func.func @transform_5(%arg0: i32, %arg1: i32) -> (i32, i32) {
    %c0_i32 = arith.constant 0 : i32
    %c0_i32_0 = arith.constant 0 : i32
    %c0_i32_1 = arith.constant 0 : i32
    return %c0_i32, %c0_i32_0 : i32, i32
  }
  func.func @transform_6(%arg0: i32, %arg1: i32) -> (i32, i32) {
    %c0_i32 = arith.constant 0 : i32
    %c0_i32_0 = arith.constant 0 : i32
    %c0_i32_1 = arith.constant 0 : i32
    return %c0_i32, %c0_i32_0 : i32, i32
  }
  func.func @transform_7(%arg0: i32, %arg1: i32) -> (i32, i32) {
    %c0_i32 = arith.constant 0 : i32
    %c0_i32_0 = arith.constant 0 : i32
    %c0_i32_1 = arith.constant 0 : i32
    return %c0_i32, %c0_i32_0 : i32, i32
  }
  func.func @transform_8(%arg0: i32, %arg1: i32) -> (i32, i32) {
    %c0_i32 = arith.constant 0 : i32
    %c0_i32_0 = arith.constant 0 : i32
    %c0_i32_1 = arith.constant 0 : i32
    return %c0_i32, %c0_i32_0 : i32, i32
  }
  func.func @transform_9(%arg0: i32, %arg1: i32) -> (i32, i32, i32, i32) {
    %c0_i32 = arith.constant 0 : i32
    %c0_i32_0 = arith.constant 0 : i32
    %c0_i32_1 = arith.constant 0 : i32
    return %arg0, %c0_i32, %arg1, %c0_i32_0 : i32, i32, i32, i32
  }
  func.func @transform_10(%arg0: i32, %arg1: i32) -> (i32, i32, i32, i32) {
    %c0_i32 = arith.constant 0 : i32
    %c0_i32_0 = arith.constant 0 : i32
    %c0_i32_1 = arith.constant 0 : i32
    return %arg0, %c0_i32, %arg1, %c0_i32_0 : i32, i32, i32, i32
  }
  func.func @transform_11(%arg0: i32, %arg1: i32) -> (i32, i32, i32, i32) {
    %c0_i32 = arith.constant 0 : i32
    %c0_i32_0 = arith.constant 0 : i32
    %c0_i32_1 = arith.constant 0 : i32
    return %arg0, %c0_i32, %arg1, %c0_i32_0 : i32, i32, i32, i32
  }
}

</mosaic_0001>

<llo_original>
// kernel: tpu_custom_call.1
$region0: #{tpu_custom_call.1}
  #allocation0 [shape = 'u32[]', space=smem, size = 0x4, offset = 0x4, fixed_abs, tag = 'smem constant byte address 0x4 - core index']
  #allocation1 [shape = 'u32[144,128]{1,0:T(1,128)}', space=vmem, size = 0x12000, scoped, tag = 'internal scratch']
  %s0 = inlined_call_operand.hbm [shape: f32[2,8,32], index: 0, kind: input, shape index: {}]
  %s1 = inlined_call_operand.hbm [shape: f32[2,8,32], index: 1, kind: input, shape index: {}]
  %s2 = inlined_call_operand.hbm [shape: f32[2,8,32], index: 2, kind: input, shape index: {}]
  %s3 = inlined_call_operand.hbm [shape: f32[32,32], index: 3, kind: input, shape index: {}]
  %s4 = inlined_call_operand.vmem [shape: f32[1,32], index: 4, kind: input, shape index: {}]
  %s5 = inlined_call_operand.hbm [shape: f32[32,32], index: 5, kind: input, shape index: {}]
  %s6 = inlined_call_operand.vmem [shape: f32[1,32], index: 6, kind: input, shape index: {}]
  %s7 = inlined_call_operand.hbm [shape: f32[32,32], index: 7, kind: input, shape index: {}]
  %s8 = inlined_call_operand.vmem [shape: f32[1,32], index: 8, kind: input, shape index: {}]
  %s9 = inlined_call_operand.hbm [shape: f32[2,4,8,8], index: 9, kind: output, shape index: {0}]
  %s10 = inlined_call_operand.hbm [shape: f32[2,4,8,8], index: 10, kind: output, shape index: {1}]
  %s11 = inlined_call_operand.hbm [shape: f32[2,4,8,8], index: 11, kind: output, shape index: {2}]
  %12 = xla_tuple %s9, %s10, %s11
  %s13 = sld [smem:[#allocation0]]
  $region109: #{tpu_custom_call.1} parent=0
    _
  %s15 = ssub.s32 1, %s13
  %s16 = scalar_select 0, %s15, %s13
  $region1: #{tpu_custom_call.1} parent=0
    #allocation2 [shape = 'u8[8192]{0}', space=vmem, size = 0x2000, scoped, tag = 'input window, operand 0']
    #allocation3 [shape = 's32[2]{0}', space=sflag, size = 0x8, scoped, tag = 'scoped memory for tpu_custom_call.1']
    #allocation4 [shape = 's32[2]{0}', space=sflag, size = 0x8, scoped, tag = 'scoped memory for tpu_custom_call.1']
    #allocation5 [shape = 'u8[8192]{0}', space=vmem, size = 0x2000, scoped, tag = 'input window, operand 1']
    #allocation6 [shape = 's32[2]{0}', space=sflag, size = 0x8, scoped, tag = 'scoped memory for tpu_custom_call.1']
    #allocation7 [shape = 'u8[8192]{0}', space=vmem, size = 0x2000, scoped, tag = 'input window, operand 2']
    #allocation8 [shape = 'u8[16384]{0}', space=vmem, size = 0x4000, scoped, tag = 'input window, operand 3, single buffered']
    #allocation9 [shape = 's32[1]{0}', space=sflag, size = 0x4, scoped, tag = 'scoped memory for tpu_custom_call.1']
    #allocation10 [shape = 'u8[16384]{0}', space=vmem, size = 0x4000, scoped, tag = 'input window, operand 5, single buffered']
    #allocation11 [shape = 'u8[16384]{0}', space=vmem, size = 0x4000, scoped, tag = 'input window, operand 7, single buffered']
    #allocation12 [shape = 's32[1]{0}', space=sflag, size = 0x4, scoped, tag = 'scoped memory for tpu_custom_call.1']
    #allocation13 [shape = 'u8[32768]{0}', space=vmem, size = 0x8000, scoped, tag = 'output window, operand 0']
    #allocation14 [shape = 'u8[32768]{0}', space=vmem, size = 0x8000, scoped, tag = 'output window, operand 1']
    #allocation15 [shape = 's32[2]{0}', space=sflag, size = 0x8, scoped, tag = 'scoped memory for tpu_custom_call.1']
    #allocation16 [shape = 'u8[32768]{0}', space=vmem, size = 0x8000, scoped, tag = 'output window, operand 2']
    %17 = vsyncpa [#allocation3], 0
    %s18 = scalar_lea.sflag [#allocation3], 1
    %19 = vsyncpa %s18, 0
    %20 = vsyncpa [#allocation6], 0
    %s21 = scalar_lea.sflag [#allocation6], 1
    %22 = vsyncpa %s21, 0
    %23 = vsyncpa [#allocation9], 0
    %24 = vsyncpa [#allocation12], 0
    %25 = vsyncpa [#allocation4], 0
    %s26 = scalar_lea.sflag [#allocation4], 1
    %27 = vsyncpa %s26, 0
    %28 = vsyncpa [#allocation15], 0
    %s29 = scalar_lea.sflag [#allocation15], 1
    %30 = vsyncpa %s29, 0
    loop: start=0, step=1, limit=4
    $region2: #{tpu_custom_call.1} parent=1 // loop_pre_header
      _
    $region3: #{tpu_custom_call.1} parent=1 // loop_header
      %s32 = sphi 0, %s36
      %p33 = scmp.ge.s32.totalorder %s32, 4
      %s39 = sphi 0, %s51
      %s40 = sphi 0, %s47
      %s41 = sphi 0, %s39
      %s42 = sphi 0, %s40
      %s43 = sphi 0, %s41
      %s44 = sphi 0, %s42
      %s56 = sphi 0, %s58
      %s59 = sphi 0, %s56
      %s60 = sphi 0, %s59
      %s76 = sphi 0, %s60
      %s84 = sphi 0, %s86
      %s87 = sphi 0, %s84
      %s88 = sphi 0, %s87
      %s104 = sphi 0, %s88
      %s112 = sphi 0, %s114
      %s115 = sphi 0, %s112
      %s116 = sphi 0, %s115
      %s132 = sphi 0, %s116
      %s136 = sphi 0, %s136
      %s138 = sphi 0, %s136
      %s139 = sphi 0, %s138
      %s153 = sphi 0, %s139
      %s157 = sphi 0, %s157
      %s159 = sphi 0, %s157
      %s160 = sphi 0, %s159
      %s174 = sphi 0, %s160
      %s178 = sphi 0, %s178
      %s180 = sphi 0, %s178
      %s181 = sphi 0, %s180
      %s195 = sphi 0, %s181
      %s199 = sphi 0, %s199
      %s201 = sphi 0, %s199
      %s202 = sphi 0, %s201
      %s216 = sphi 0, %s202
      %s220 = sphi 0, %s220
      %s222 = sphi 0, %s220
      %s223 = sphi 0, %s222
      %s237 = sphi 0, %s223
      %s241 = sphi 0, %s241
      %s243 = sphi 0, %s241
      %s244 = sphi 0, %s243
      %s258 = sphi 0, %s244
      %s266 = sphi 0, %s268
      %s269 = sphi 0, %s266
      %s270 = sphi 0, %s269
      %s286 = sphi 0, %s270
      %s294 = sphi 0, %s296
      %s297 = sphi 0, %s294
      %s298 = sphi 0, %s297
      %s314 = sphi 0, %s298
      %s322 = sphi 0, %s324
      %s325 = sphi 0, %s322
      %s326 = sphi 0, %s325
      %s342 = sphi 0, %s326
    $region4: #{tpu_custom_call.1} parent=1 // loop_header_branch
      %35 = sbr.rel (%p33) target = $region8
    $region5: #{tpu_custom_call.1} parent=1 // loop_body
      %s37 = ssub.s32 %s32, 1
      %s38 = ssub.s32 %s32, 2
      %s45 = sadd.s32 1, %s40
      %p46 = scmp.ge.s32.totalorder %s45, 1
      %s47 = scalar_select %p46, 0, %s45
      %s48 = sadd.s32 1, %s39
      %s49 = scalar_select %p46, %s48, %s39
      %p50 = scmp.ge.s32.totalorder %s49, 2
      %s51 = scalar_select %p50, 0, %s49
      %s52 = ssub.s32 %s39, %s51
      %s53 = ssub.s32 %s40, %s47
      %s54 = sor.u32 %s52, %s53
      %p55 = scmp.eq.s32.totalorder %s54, 0
      %s57 = sadd.s32 %s56, 1
      %s58 = scalar_select %p55, %s56, %s57
      %p61 = pneg %p55
      %p62 = scmp.eq.s32.totalorder %s32, 1
      %p63 = por %p61, %p62
      %p64 = scmp.ne.s32.totalorder %s56, %s59
      %p65 = scmp.eq.s32.totalorder %s32, 0
      %p66 = por %p64, %p65
      %p67 = scmp.ne.s32.totalorder %s56, %s59
      %p68 = scmp.eq.s32.totalorder %s37, 1
      %p69 = por %p67, %p68
      %p70 = scmp.ne.s32.totalorder %s59, %s60
      %p71 = scmp.eq.s32.totalorder %s37, 0
      %p72 = por %p70, %p71
      %p73 = scmp.ne.s32.totalorder %s59, %s60
      %p74 = scmp.eq.s32.totalorder %s38, 1
      %p75 = por %p73, %p74
      %p77 = scmp.ne.s32.totalorder %s60, %s76
      %p78 = scmp.eq.s32.totalorder %s38, 0
      %p79 = por %p77, %p78
      %s80 = ssub.s32 %s39, %s51
      %s81 = ssub.s32 %s40, %s47
      %s82 = sor.u32 %s80, %s81
      %p83 = scmp.eq.s32.totalorder %s82, 0
      %s85 = sadd.s32 %s84, 1
      %s86 = scalar_select %p83, %s84, %s85
      %p89 = pneg %p83
      %p90 = scmp.eq.s32.totalorder %s32, 1
      %p91 = por %p89, %p90
      %p92 = scmp.ne.s32.totalorder %s84, %s87
      %p93 = scmp.eq.s32.totalorder %s32, 0
      %p94 = por %p92, %p93
      %p95 = scmp.ne.s32.totalorder %s84, %s87
      %p96 = scmp.eq.s32.totalorder %s37, 1
      %p97 = por %p95, %p96
      %p98 = scmp.ne.s32.totalorder %s87, %s88
      %p99 = scmp.eq.s32.totalorder %s37, 0
      %p100 = por %p98, %p99
      %p101 = scmp.ne.s32.totalorder %s87, %s88
      %p102 = scmp.eq.s32.totalorder %s38, 1
      %p103 = por %p101, %p102
      %p105 = scmp.ne.s32.totalorder %s88, %s104
      %p106 = scmp.eq.s32.totalorder %s38, 0
      %p107 = por %p105, %p106
      %s108 = ssub.s32 %s39, %s51
      %s109 = ssub.s32 %s40, %s47
      %s110 = sor.u32 %s108, %s109
      %p111 = scmp.eq.s32.totalorder %s110, 0
      %s113 = sadd.s32 %s112, 1
      %s114 = scalar_select %p111, %s112, %s113
      %p117 = pneg %p111
      %p118 = scmp.eq.s32.totalorder %s32, 1
      %p119 = por %p117, %p118
      %p120 = scmp.ne.s32.totalorder %s112, %s115
      %p121 = scmp.eq.s32.totalorder %s32, 0
      %p122 = por %p120, %p121
      %p123 = scmp.ne.s32.totalorder %s112, %s115
      %p124 = scmp.eq.s32.totalorder %s37, 1
      %p125 = por %p123, %p124
      %p126 = scmp.ne.s32.totalorder %s115, %s116
      %p127 = scmp.eq.s32.totalorder %s37, 0
      %p128 = por %p126, %p127
      %p129 = scmp.ne.s32.totalorder %s115, %s116
      %p130 = scmp.eq.s32.totalorder %s38, 1
      %p131 = por %p129, %p130
      %p133 = scmp.ne.s32.totalorder %s116, %s132
      %p134 = scmp.eq.s32.totalorder %s38, 0
      %p135 = por %p133, %p134
      %s137 = sadd.s32 %s136, 1
      %p140 = scmp.eq.s32.totalorder %s32, 1
      %p141 = scmp.ne.s32.totalorder %s136, %s138
      %p142 = scmp.eq.s32.totalorder %s32, 0
      %p143 = por %p141, %p142
      %p144 = scmp.ne.s32.totalorder %s136, %s138
      %p145 = scmp.eq.s32.totalorder %s37, 1
      %p146 = por %p144, %p145
      %p147 = scmp.ne.s32.totalorder %s138, %s139
      %p148 = scmp.eq.s32.totalorder %s37, 0
      %p149 = por %p147, %p148
      %p150 = scmp.ne.s32.totalorder %s138, %s139
      %p151 = scmp.eq.s32.totalorder %s38, 1
      %p152 = por %p150, %p151
      %p154 = scmp.ne.s32.totalorder %s139, %s153
      %p155 = scmp.eq.s32.totalorder %s38, 0
      %p156 = por %p154, %p155
      %s158 = sadd.s32 %s157, 1
      %p161 = scmp.eq.s32.totalorder %s32, 1
      %p162 = scmp.ne.s32.totalorder %s157, %s159
      %p163 = scmp.eq.s32.totalorder %s32, 0
      %p164 = por %p162, %p163
      %p165 = scmp.ne.s32.totalorder %s157, %s159
      %p166 = scmp.eq.s32.totalorder %s37, 1
      %p167 = por %p165, %p166
      %p168 = scmp.ne.s32.totalorder %s159, %s160
      %p169 = scmp.eq.s32.totalorder %s37, 0
      %p170 = por %p168, %p169
      %p171 = scmp.ne.s32.totalorder %s159, %s160
      %p172 = scmp.eq.s32.totalorder %s38, 1
      %p173 = por %p171, %p172
      %p175 = scmp.ne.s32.totalorder %s160, %s174
      %p176 = scmp.eq.s32.totalorder %s38, 0
      %p177 = por %p175, %p176
      %s179 = sadd.s32 %s178, 1
      %p182 = scmp.eq.s32.totalorder %s32, 1
      %p183 = scmp.ne.s32.totalorder %s178, %s180
      %p184 = scmp.eq.s32.totalorder %s32, 0
      %p185 = por %p183, %p184
      %p186 = scmp.ne.s32.totalorder %s178, %s180
      %p187 = scmp.eq.s32.totalorder %s37, 1
      %p188 = por %p186, %p187
      %p189 = scmp.ne.s32.totalorder %s180, %s181
      %p190 = scmp.eq.s32.totalorder %s37, 0
      %p191 = por %p189, %p190
      %p192 = scmp.ne.s32.totalorder %s180, %s181
      %p193 = scmp.eq.s32.totalorder %s38, 1
      %p194 = por %p192, %p193
      %p196 = scmp.ne.s32.totalorder %s181, %s195
      %p197 = scmp.eq.s32.totalorder %s38, 0
      %p198 = por %p196, %p197
      %s200 = sadd.s32 %s199, 1
      %p203 = scmp.eq.s32.totalorder %s32, 1
      %p204 = scmp.ne.s32.totalorder %s199, %s201
      %p205 = scmp.eq.s32.totalorder %s32, 0
      %p206 = por %p204, %p205
      %p207 = scmp.ne.s32.totalorder %s199, %s201
      %p208 = scmp.eq.s32.totalorder %s37, 1
      %p209 = por %p207, %p208
      %p210 = scmp.ne.s32.totalorder %s201, %s202
      %p211 = scmp.eq.s32.totalorder %s37, 0
      %p212 = por %p210, %p211
      %p213 = scmp.ne.s32.totalorder %s201, %s202
      %p214 = scmp.eq.s32.totalorder %s38, 1
      %p215 = por %p213, %p214
      %p217 = scmp.ne.s32.totalorder %s202, %s216
      %p218 = scmp.eq.s32.totalorder %s38, 0
      %p219 = por %p217, %p218
      %s221 = sadd.s32 %s220, 1
      %p224 = scmp.eq.s32.totalorder %s32, 1
      %p225 = scmp.ne.s32.totalorder %s220, %s222
      %p226 = scmp.eq.s32.totalorder %s32, 0
      %p227 = por %p225, %p226
      %p228 = scmp.ne.s32.totalorder %s220, %s222
      %p229 = scmp.eq.s32.totalorder %s37, 1
      %p230 = por %p228, %p229
      %p231 = scmp.ne.s32.totalorder %s222, %s223
      %p232 = scmp.eq.s32.totalorder %s37, 0
      %p233 = por %p231, %p232
      %p234 = scmp.ne.s32.totalorder %s222, %s223
      %p235 = scmp.eq.s32.totalorder %s38, 1
      %p236 = por %p234, %p235
      %p238 = scmp.ne.s32.totalorder %s223, %s237
      %p239 = scmp.eq.s32.totalorder %s38, 0
      %p240 = por %p238, %p239
      %s242 = sadd.s32 %s241, 1
      %p245 = scmp.eq.s32.totalorder %s32, 1
      %p246 = scmp.ne.s32.totalorder %s241, %s243
      %p247 = scmp.eq.s32.totalorder %s32, 0
      %p248 = por %p246, %p247
      %p249 = scmp.ne.s32.totalorder %s241, %s243
      %p250 = scmp.eq.s32.totalorder %s37, 1
      %p251 = por %p249, %p250
      %p252 = scmp.ne.s32.totalorder %s243, %s244
      %p253 = scmp.eq.s32.totalorder %s37, 0
      %p254 = por %p252, %p253
      %p255 = scmp.ne.s32.totalorder %s243, %s244
      %p256 = scmp.eq.s32.totalorder %s38, 1
      %p257 = por %p255, %p256
      %p259 = scmp.ne.s32.totalorder %s244, %s258
      %p260 = scmp.eq.s32.totalorder %s38, 0
      %p261 = por %p259, %p260
      %s262 = ssub.s32 %s39, %s51
      %s263 = ssub.s32 %s40, %s47
      %s264 = sor.u32 %s262, %s263
      %p265 = scmp.eq.s32.totalorder %s264, 0
      %s267 = sadd.s32 %s266, 1
      %s268 = scalar_select %p265, %s266, %s267
      %p271 = pneg %p265
      %p272 = scmp.eq.s32.totalorder %s32, 1
      %p273 = por %p271, %p272
      %p274 = scmp.ne.s32.totalorder %s266, %s269
      %p275 = scmp.eq.s32.totalorder %s32, 0
      %p276 = por %p274, %p275
      %p277 = scmp.ne.s32.totalorder %s266, %s269
      %p278 = scmp.eq.s32.totalorder %s37, 1
      %p279 = por %p277, %p278
      %p280 = scmp.ne.s32.totalorder %s269, %s270
      %p281 = scmp.eq.s32.totalorder %s37, 0
      %p282 = por %p280, %p281
      %p283 = scmp.ne.s32.totalorder %s269, %s270
      %p284 = scmp.eq.s32.totalorder %s38, 1
      %p285 = por %p283, %p284
      %p287 = scmp.ne.s32.totalorder %s270, %s286
      %p288 = scmp.eq.s32.totalorder %s38, 0
      %p289 = por %p287, %p288
      %s290 = ssub.s32 %s39, %s51
      %s291 = ssub.s32 %s40, %s47
      %s292 = sor.u32 %s290, %s291
      %p293 = scmp.eq.s32.totalorder %s292, 0
      %s295 = sadd.s32 %s294, 1
      %s296 = scalar_select %p293, %s294, %s295
      %p299 = pneg %p293
      %p300 = scmp.eq.s32.totalorder %s32, 1
      %p301 = por %p299, %p300
      %p302 = scmp.ne.s32.totalorder %s294, %s297
      %p303 = scmp.eq.s32.totalorder %s32, 0
      %p304 = por %p302, %p303
      %p305 = scmp.ne.s32.totalorder %s294, %s297
      %p306 = scmp.eq.s32.totalorder %s37, 1
      %p307 = por %p305, %p306
      %p308 = scmp.ne.s32.totalorder %s297, %s298
      %p309 = scmp.eq.s32.totalorder %s37, 0
      %p310 = por %p308, %p309
      %p311 = scmp.ne.s32.totalorder %s297, %s298
      %p312 = scmp.eq.s32.totalorder %s38, 1
      %p313 = por %p311, %p312
      %p315 = scmp.ne.s32.totalorder %s298, %s314
      %p316 = scmp.eq.s32.totalorder %s38, 0
      %p317 = por %p315, %p316
      %s318 = ssub.s32 %s39, %s51
      %s319 = ssub.s32 %s40, %s47
      %s320 = sor.u32 %s318, %s319
      %p321 = scmp.eq.s32.totalorder %s320, 0
      %s323 = sadd.s32 %s322, 1
      %s324 = scalar_select %p321, %s322, %s323
      %p327 = pneg %p321
      %p328 = scmp.eq.s32.totalorder %s32, 1
      %p329 = por %p327, %p328
      %p330 = scmp.ne.s32.totalorder %s322, %s325
      %p331 = scmp.eq.s32.totalorder %s32, 0
      %p332 = por %p330, %p331
      %p333 = scmp.ne.s32.totalorder %s322, %s325
      %p334 = scmp.eq.s32.totalorder %s37, 1
      %p335 = por %p333, %p334
      %p336 = scmp.ne.s32.totalorder %s325, %s326
      %p337 = scmp.eq.s32.totalorder %s37, 0
      %p338 = por %p336, %p337
      %p339 = scmp.ne.s32.totalorder %s325, %s326
      %p340 = scmp.eq.s32.totalorder %s38, 1
      %p341 = por %p339, %p340
      %p343 = scmp.ne.s32.totalorder %s326, %s342
      %p344 = scmp.eq.s32.totalorder %s38, 0
      %p345 = por %p343, %p344
      %p346 = scmp.le.s32.totalorder 1, %s32
      %p347 = scmp.lt.s32.totalorder %s32, 3
      %p348 = pnand %p346, %p347
      %p349 = pneg %p348
      // Predicated region
      $region9: #{tpu_custom_call.1} parent=5 // pred_check
        _
      $region10: #{tpu_custom_call.1} parent=5 // pred_check_branch
        %351 = sbr.rel (%p348) target = $region12
      $region11: #{tpu_custom_call.1} parent=5 // pred_region
        %s352 = ssub.s32 %s32, 1
        // Predicated region
        $region13: #{tpu_custom_call.1} parent=11 // pred_check
          %p353 = pneg %p149
        $region14: #{tpu_custom_call.1} parent=11 // pred_check_branch
          %355 = sbr.rel (%p353) target = $region16
        $region15: #{tpu_custom_call.1} parent=11 // pred_region
          %s357 = ssub.s32 512, 512
          %358 = vsyncadd [#allocation9], %s357
          %s359 = sshll.u32 [#allocation8], 4
          %s360 = int_to_ptr.vmem [resolvable:$true] %s359
          %365 = dma.hbm_to_vmem [thread:$0]  %s3, 512, %s360, [#allocation9], 128, 128, 8
        $region16: #{tpu_custom_call.1} parent=11 // pred_fallthru
          _
        // Predicated region
        $region17: #{tpu_custom_call.1} parent=11 // pred_check
          %p366 = pneg %p170
        $region18: #{tpu_custom_call.1} parent=11 // pred_check_branch
          %368 = sbr.rel (%p366) target = $region20
        $region19: #{tpu_custom_call.1} parent=11 // pred_region
          _
        $region20: #{tpu_custom_call.1} parent=11 // pred_fallthru
          _
        // Predicated region
        $region21: #{tpu_custom_call.1} parent=11 // pred_check
          %p369 = pneg %p191
        $region22: #{tpu_custom_call.1} parent=11 // pred_check_branch
          %371 = sbr.rel (%p369) target = $region24
        $region23: #{tpu_custom_call.1} parent=11 // pred_region
          %s373 = ssub.s32 512, 512
          %374 = vsyncadd [#allocation9], %s373
          %s375 = sshll.u32 [#allocation10], 4
          %s376 = int_to_ptr.vmem [resolvable:$true] %s375
          %381 = dma.hbm_to_vmem [thread:$0]  %s5, 512, %s376, [#allocation9], 128, 128, 8
        $region24: #{tpu_custom_call.1} parent=11 // pred_fallthru
          _
        // Predicated region
        $region25: #{tpu_custom_call.1} parent=11 // pred_check
          %p382 = pneg %p212
        $region26: #{tpu_custom_call.1} parent=11 // pred_check_branch
          %384 = sbr.rel (%p382) target = $region28
        $region27: #{tpu_custom_call.1} parent=11 // pred_region
          _
        $region28: #{tpu_custom_call.1} parent=11 // pred_fallthru
          _
        // Predicated region
        $region29: #{tpu_custom_call.1} parent=11 // pred_check
          %p385 = pneg %p233
        $region30: #{tpu_custom_call.1} parent=11 // pred_check_branch
          %387 = sbr.rel (%p385) target = $region32
        $region31: #{tpu_custom_call.1} parent=11 // pred_region
          %s389 = ssub.s32 512, 512
          %390 = vsyncadd [#allocation12], %s389
          %s391 = sshll.u32 [#allocation11], 4
          %s392 = int_to_ptr.vmem [resolvable:$true] %s391
          %397 = dma.hbm_to_vmem [thread:$0]  %s7, 512, %s392, [#allocation12], 128, 128, 8
        $region32: #{tpu_custom_call.1} parent=11 // pred_fallthru
          _
        // Predicated region
        $region33: #{tpu_custom_call.1} parent=11 // pred_check
          %p398 = pneg %p254
        $region34: #{tpu_custom_call.1} parent=11 // pred_check_branch
          %400 = sbr.rel (%p398) target = $region36
        $region35: #{tpu_custom_call.1} parent=11 // pred_region
          _
        $region36: #{tpu_custom_call.1} parent=11 // pred_fallthru
          _
      $region12: #{tpu_custom_call.1} parent=5 // pred_fallthru
        _
      %p401 = scmp.lt.s32.totalorder %s32, 2
      // Predicated region
      $region37: #{tpu_custom_call.1} parent=5 // pred_check
        %p402 = pneg %p401
      $region38: #{tpu_custom_call.1} parent=5 // pred_check_branch
        %404 = sbr.rel (%p402) target = $region40
      $region39: #{tpu_custom_call.1} parent=5 // pred_region
        // Predicated region
        $region41: #{tpu_custom_call.1} parent=39 // pred_check
          %p405 = pneg %p66
        $region42: #{tpu_custom_call.1} parent=39 // pred_check_branch
          %407 = sbr.rel (%p405) target = $region44
        $region43: #{tpu_custom_call.1} parent=39 // pred_region
          %s408 = sand.u32 %s56, 1
          %s409 = scalar_lea.sflag [#allocation3], %s408
          %s410 = sand.u32 %s56, 1
          %s411 = smul.addr %s410, 8
          %s412 = scalar_lea.vmem [#allocation2], %s411
          %s414 = ssub.s32 128, 128
          %415 = vsyncadd %s409, %s414
          %s416 = sadd.s32 %s40, %s39
          %s417 = smul.addr %s416, 128
          %s418 = scalar_lea.hbm %s0, %s417
          %s420 = sshll.u32 %s412, 4
          %s421 = int_to_ptr.vmem [resolvable:$true] %s420
          %423 = dma.hbm_to_vmem [thread:$0]  %s418, 128, %s421, %s409
        $region44: #{tpu_custom_call.1} parent=39 // pred_fallthru
          _
        // Predicated region
        $region45: #{tpu_custom_call.1} parent=39 // pred_check
          %p424 = pneg %p94
        $region46: #{tpu_custom_call.1} parent=39 // pred_check_branch
          %426 = sbr.rel (%p424) target = $region48
        $region47: #{tpu_custom_call.1} parent=39 // pred_region
          %s427 = sand.u32 %s32, 1
          %s428 = scalar_lea.sflag [#allocation6], %s427
          %s429 = sand.u32 %s84, 1
          %s430 = smul.addr %s429, 8
          %s431 = scalar_lea.vmem [#allocation5], %s430
          %s433 = ssub.s32 128, 128
          %434 = vsyncadd %s428, %s433
          %s435 = sadd.s32 %s40, %s39
          %s436 = smul.addr %s435, 128
          %s437 = scalar_lea.hbm %s1, %s436
          %s439 = sshll.u32 %s431, 4
          %s440 = int_to_ptr.vmem [resolvable:$true] %s439
          %442 = dma.hbm_to_vmem [thread:$0]  %s437, 128, %s440, %s428
        $region48: #{tpu_custom_call.1} parent=39 // pred_fallthru
          _
        // Predicated region
        $region49: #{tpu_custom_call.1} parent=39 // pred_check
          %p443 = pneg %p122
        $region50: #{tpu_custom_call.1} parent=39 // pred_check_branch
          %445 = sbr.rel (%p443) target = $region52
        $region51: #{tpu_custom_call.1} parent=39 // pred_region
          %s446 = sand.u32 %s32, 1
          %s447 = scalar_lea.sflag [#allocation6], %s446
          %s448 = sand.u32 %s112, 1
          %s449 = smul.addr %s448, 8
          %s450 = scalar_lea.vmem [#allocation7], %s449
          %s452 = ssub.s32 128, 128
          %453 = vsyncadd %s447, %s452
          %s454 = sadd.s32 %s40, %s39
          %s455 = smul.addr %s454, 128
          %s456 = scalar_lea.hbm %s2, %s455
          %s458 = sshll.u32 %s450, 4
          %s459 = int_to_ptr.vmem [resolvable:$true] %s458
          %461 = dma.hbm_to_vmem [thread:$0]  %s456, 128, %s459, %s447
        $region52: #{tpu_custom_call.1} parent=39 // pred_fallthru
          _
      $region40: #{tpu_custom_call.1} parent=5 // pred_fallthru
        _
      %p462 = scmp.le.s32.totalorder 1, %s32
      %p463 = scmp.lt.s32.totalorder %s32, 3
      %p464 = pnand %p462, %p463
      %p465 = pneg %p464
      // Predicated region
      $region53: #{tpu_custom_call.1} parent=5 // pred_check
        _
      $region54: #{tpu_custom_call.1} parent=5 // pred_check_branch
        %467 = sbr.rel (%p464) target = $region56
      $region55: #{tpu_custom_call.1} parent=5 // pred_region
        %s468 = ssub.s32 %s32, 1
        %s469 = sand.u32 %s59, 1
        %s470 = scalar_lea.sflag [#allocation3], %s469
        %s471 = sand.u32 %s59, 1
        %s472 = smul.addr %s471, 8
        %s473 = scalar_lea.vmem [#allocation2], %s472
        // Predicated region
        $region57: #{tpu_custom_call.1} parent=55 // pred_check
          %p474 = pneg %p72
        $region58: #{tpu_custom_call.1} parent=55 // pred_check_branch
          %476 = sbr.rel (%p474) target = $region60
        $region59: #{tpu_custom_call.1} parent=55 // pred_region
          %477 = dma.done %s470, 128
        $region60: #{tpu_custom_call.1} parent=55 // pred_fallthru
          _
        %s478 = sand.u32 %s37, 1
        %s479 = scalar_lea.sflag [#allocation6], %s478
        %s480 = sand.u32 %s87, 1
        %s481 = smul.addr %s480, 8
        %s482 = scalar_lea.vmem [#allocation5], %s481
        // Predicated region
        $region61: #{tpu_custom_call.1} parent=55 // pred_check
          %p483 = pneg %p100
        $region62: #{tpu_custom_call.1} parent=55 // pred_check_branch
          %485 = sbr.rel (%p483) target = $region64
        $region63: #{tpu_custom_call.1} parent=55 // pred_region
          %486 = dma.done %s479, 128
        $region64: #{tpu_custom_call.1} parent=55 // pred_fallthru
          _
        %s487 = sand.u32 %s37, 1
        %s488 = scalar_lea.sflag [#allocation6], %s487
        %s489 = sand.u32 %s115, 1
        %s490 = smul.addr %s489, 8
        %s491 = scalar_lea.vmem [#allocation7], %s490
        // Predicated region
        $region65: #{tpu_custom_call.1} parent=55 // pred_check
          %p492 = pneg %p128
        $region66: #{tpu_custom_call.1} parent=55 // pred_check_branch
          %494 = sbr.rel (%p492) target = $region68
        $region67: #{tpu_custom_call.1} parent=55 // pred_region
          %495 = dma.done %s488, 128
        $region68: #{tpu_custom_call.1} parent=55 // pred_fallthru
          _
        // Predicated region
        $region69: #{tpu_custom_call.1} parent=55 // pred_check
          %p496 = pneg %p149
        $region70: #{tpu_custom_call.1} parent=55 // pred_check_branch
          %498 = sbr.rel (%p496) target = $region72
        $region71: #{tpu_custom_call.1} parent=55 // pred_region
          %499 = dma.done [#allocation9], 512
        $region72: #{tpu_custom_call.1} parent=55 // pred_fallthru
          _
        // Predicated region
        $region73: #{tpu_custom_call.1} parent=55 // pred_check
          %p500 = pneg %p191
        $region74: #{tpu_custom_call.1} parent=55 // pred_check_branch
          %502 = sbr.rel (%p500) target = $region76
        $region75: #{tpu_custom_call.1} parent=55 // pred_region
          %503 = dma.done [#allocation9], 512
        $region76: #{tpu_custom_call.1} parent=55 // pred_fallthru
          _
        // Predicated region
        $region77: #{tpu_custom_call.1} parent=55 // pred_check
          %p504 = pneg %p233
        $region78: #{tpu_custom_call.1} parent=55 // pred_check_branch
          %506 = sbr.rel (%p504) target = $region80
        $region79: #{tpu_custom_call.1} parent=55 // pred_region
          %507 = dma.done [#allocation12], 512
        $region80: #{tpu_custom_call.1} parent=55 // pred_fallthru
          _
        %s508 = sand.u32 %s59, 1
        %s509 = scalar_lea.sflag [#allocation3], %s508
        %s510 = sand.u32 %s59, 1
        %s511 = smul.addr %s510, 8
        %s512 = scalar_lea.vmem [#allocation2], %s511
        %p513 = pneg %p72
        %p514 = pneg %p69
        %s515 = sand.u32 %s37, 1
        %s516 = scalar_lea.sflag [#allocation6], %s515
        %s517 = sand.u32 %s87, 1
        %s518 = smul.addr %s517, 8
        %s519 = scalar_lea.vmem [#allocation5], %s518
        %p520 = pneg %p100
        %p521 = pneg %p97
        %s522 = sand.u32 %s37, 1
        %s523 = scalar_lea.sflag [#allocation6], %s522
        %s524 = sand.u32 %s115, 1
        %s525 = smul.addr %s524, 8
        %s526 = scalar_lea.vmem [#allocation7], %s525
        %p527 = pneg %p128
        %p528 = pneg %p125
        %p529 = pneg %p149
        %p530 = pneg %p146
        %p531 = pneg %p170
        %p532 = pneg %p167
        %p533 = pneg %p191
        %p534 = pneg %p188
        %p535 = pneg %p212
        %p536 = pneg %p209
        %p537 = pneg %p233
        %p538 = pneg %p230
        %p539 = pneg %p254
        %p540 = pneg %p251
        %p541 = pneg %p282
        %p542 = pneg %p279
        %s543 = sand.u32 %s269, 1
        %s544 = scalar_lea.sflag [#allocation4], %s543
        %s545 = sand.u32 %s269, 1
        %s546 = smul.addr %s545, 32
        %s547 = scalar_lea.vmem [#allocation13], %s546
        %p548 = pneg %p310
        %p549 = pneg %p307
        %s550 = sand.u32 %s37, 1
        %s551 = scalar_lea.sflag [#allocation15], %s550
        %s552 = sand.u32 %s297, 1
        %s553 = smul.addr %s552, 32
        %s554 = scalar_lea.vmem [#allocation14], %s553
        %p555 = pneg %p338
        %p556 = pneg %p335
        %s557 = sand.u32 %s37, 1
        %s558 = scalar_lea.sflag [#allocation15], %s557
        %s559 = sand.u32 %s325, 1
        %s560 = smul.addr %s559, 32
        %s561 = scalar_lea.vmem [#allocation16], %s560
        %v562 = vld [vmem:[%s473] sm:$0xff]
        %v563 = vld [vmem:[#allocation8] sm:$0xff]
        %v564 = vld [vmem:[#allocation8 + $0x8] sm:$0xff]
        %v565 = vld [vmem:[#allocation8 + $0x10] sm:$0xff]
        %v566 = vld [vmem:[#allocation8 + $0x18] sm:$0xff]
        %v567 = vld [vmem:[%s4] sm:$0x1]
        %v569 = vlaneseq
        %v570 = vshrl.u32 %v569, 7
        %v571 = vsub.s32 0, %v570
        %v572 = vrot.slane %v567, %v571
        %vm574 = vcmask 261120
        %v576 = vsel %vm574, %v562, 0
        %578 = vmatprep.subr.mxu0 0.0
        %579 = vmatpush1.msra.mxu0 0.0
        %580 = vmatprep.subr.mxu0 0.0
        %581 = vmatpush1.msra.mxu0 0.0
        %582 = vmatprep.subr.mxu0 0.0
        %583 = vmatpush1.msra.mxu0 0.0
        %584 = vmatprep.subr.mxu0 0.0
        %585 = vmatpush1.msra.mxu0 0.0
        %586 = vmatprep.subr.mxu0 0.0
        %587 = vmatpush1.msra.mxu0 0.0
        %588 = vmatprep.subr.mxu0 0.0
        %589 = vmatpush1.msra.mxu0 0.0
        %590 = vmatprep.subr.mxu0 0.0
        %591 = vmatpush1.msra.mxu0 0.0
        %592 = vmatprep.subr.mxu0 0.0
        %593 = vmatpush1.msra.mxu0 0.0
        %594 = vmatprep.subr.mxu0 0.0
        %595 = vmatpush1.msra.mxu0 0.0
        %596 = vmatprep.subr.mxu0 0.0
        %597 = vmatpush1.msra.mxu0 0.0
        %598 = vmatprep.subr.mxu0 0.0
        %599 = vmatpush1.msra.mxu0 0.0
        %600 = vmatprep.subr.mxu0 0.0
        %601 = vmatpush1.msra.mxu0 0.0
        %602 = vmatprep.subr.mxu0 0.0
        %603 = vmatpush1.msra.mxu0 %v566
        %604 = vmatprep.subr.mxu0 0.0
        %605 = vmatpush1.msra.mxu0 %v565
        %606 = vmatprep.subr.mxu0 0.0
        %607 = vmatpush1.msra.mxu0 %v564
        %608 = vmatprep.subr.mxu0 0.0
        %609 = vmatpush1.msra.mxu0 %v563
        %610 = vmatprep.subr.mxu0 0.0
        %611 = vmatpush2.msra.mxu0 0.0
        %612 = vmatprep.subr.mxu0 0.0
        %613 = vmatpush2.msra.mxu0 0.0
        %614 = vmatprep.subr.mxu0 0.0
        %615 = vmatpush2.msra.mxu0 0.0
        %616 = vmatprep.subr.mxu0 0.0
        %617 = vmatpush2.msra.mxu0 0.0
        %618 = vmatprep.subr.mxu0 0.0
        %619 = vmatpush2.msra.mxu0 0.0
        %620 = vmatprep.subr.mxu0 0.0
        %621 = vmatpush2.msra.mxu0 0.0
        %622 = vmatprep.subr.mxu0 0.0
        %623 = vmatpush2.msra.mxu0 0.0
        %624 = vmatprep.subr.mxu0 0.0
        %625 = vmatpush2.msra.mxu0 0.0
        %626 = vmatprep.subr.mxu0 0.0
        %627 = vmatpush2.msra.mxu0 0.0
        %628 = vmatprep.subr.mxu0 0.0
        %629 = vmatpush2.msra.mxu0 0.0
        %630 = vmatprep.subr.mxu0 0.0
        %631 = vmatpush2.msra.mxu0 0.0
        %632 = vmatprep.subr.mxu0 0.0
        %633 = vmatpush2.msra.mxu0 0.0
        %634 = vmatprep.subr.mxu0 0.0
        %635 = vmatpush2.msra.mxu0 0.0
        %636 = vmatprep.subr.mxu0 0.0
        %637 = vmatpush2.msra.mxu0 0.0
        %638 = vmatprep.subr.mxu0 0.0
        %639 = vmatpush2.msra.mxu0 0.0
        %640 = vmatprep.subr.mxu0 0.0
        %641 = vmatpush2.msra.mxu0 0.0
        %642 = vmatprep.mubr.f32.mxu0 0.0
        %643 = vmatmul.mubr.f32.gmra.mxu0 %v576
        %v644 = vpop.f32.mrf.mxu0
        %v645 = vadd.f32 %v572, %v644
        %v646 = vpop.f32.mrf.mxu0
        %647 = vdwg.mxu0
        %649 = vrot.lane.b32.xlu0 %v645, 120
        %v650 = vpop.permute.xlu0 %649
        %652 = vrot.lane.b32.xlu0 %v645, 112
        %v653 = vpop.permute.xlu0 %652
        %655 = vrot.lane.b32.xlu0 %v645, 104
        %v656 = vpop.permute.xlu0 %655
        %vm658 = vcmask 64512
        %659 = vst.msk [vmem:[%s547] sm:$0xff] %vm658, %v645
        %660 = vst.msk [vmem:[%s547 + $0x8] sm:$0xff] %vm658, %v650
        %661 = vst.msk [vmem:[%s547 + $0x10] sm:$0xff] %vm658, %v653
        %662 = vst.msk [vmem:[%s547 + $0x18] sm:$0xff] %vm658, %v656
        %v663 = vld [vmem:[%s482] sm:$0xff]
        %v664 = vld [vmem:[#allocation10] sm:$0xff]
        %v665 = vld [vmem:[#allocation10 + $0x8] sm:$0xff]
        %v666 = vld [vmem:[#allocation10 + $0x10] sm:$0xff]
        %v667 = vld [vmem:[#allocation10 + $0x18] sm:$0xff]
        %v668 = vld [vmem:[%s6] sm:$0x1]
        %v670 = vlaneseq
        %v671 = vshrl.u32 %v670, 7
        %v672 = vsub.s32 0, %v671
        %v673 = vrot.slane %v668, %v672
        %v676 = vsel %vm574, %v663, 0
        %678 = vmatprep.subr.mxu0 0.0
        %679 = vmatpush1.msra.mxu0 0.0
        %680 = vmatprep.subr.mxu0 0.0
        %681 = vmatpush1.msra.mxu0 0.0
        %682 = vmatprep.subr.mxu0 0.0
        %683 = vmatpush1.msra.mxu0 0.0
        %684 = vmatprep.subr.mxu0 0.0
        %685 = vmatpush1.msra.mxu0 0.0
        %686 = vmatprep.subr.mxu0 0.0
        %687 = vmatpush1.msra.mxu0 0.0
        %688 = vmatprep.subr.mxu0 0.0
        %689 = vmatpush1.msra.mxu0 0.0
        %690 = vmatprep.subr.mxu0 0.0
        %691 = vmatpush1.msra.mxu0 0.0
        %692 = vmatprep.subr.mxu0 0.0
        %693 = vmatpush1.msra.mxu0 0.0
        %694 = vmatprep.subr.mxu0 0.0
        %695 = vmatpush1.msra.mxu0 0.0
        %696 = vmatprep.subr.mxu0 0.0
        %697 = vmatpush1.msra.mxu0 0.0
        %698 = vmatprep.subr.mxu0 0.0
        %699 = vmatpush1.msra.mxu0 0.0
        %700 = vmatprep.subr.mxu0 0.0
        %701 = vmatpush1.msra.mxu0 0.0
        %702 = vmatprep.subr.mxu0 0.0
        %703 = vmatpush1.msra.mxu0 %v667
        %704 = vmatprep.subr.mxu0 0.0
        %705 = vmatpush1.msra.mxu0 %v666
        %706 = vmatprep.subr.mxu0 0.0
        %707 = vmatpush1.msra.mxu0 %v665
        %708 = vmatprep.subr.mxu0 0.0
        %709 = vmatpush1.msra.mxu0 %v664
        %710 = vmatprep.subr.mxu0 0.0
        %711 = vmatpush2.msra.mxu0 0.0
        %712 = vmatprep.subr.mxu0 0.0
        %713 = vmatpush2.msra.mxu0 0.0
        %714 = vmatprep.subr.mxu0 0.0
        %715 = vmatpush2.msra.mxu0 0.0
        %716 = vmatprep.subr.mxu0 0.0
        %717 = vmatpush2.msra.mxu0 0.0
        %718 = vmatprep.subr.mxu0 0.0
        %719 = vmatpush2.msra.mxu0 0.0
        %720 = vmatprep.subr.mxu0 0.0
        %721 = vmatpush2.msra.mxu0 0.0
        %722 = vmatprep.subr.mxu0 0.0
        %723 = vmatpush2.msra.mxu0 0.0
        %724 = vmatprep.subr.mxu0 0.0
        %725 = vmatpush2.msra.mxu0 0.0
        %726 = vmatprep.subr.mxu0 0.0
        %727 = vmatpush2.msra.mxu0 0.0
        %728 = vmatprep.subr.mxu0 0.0
        %729 = vmatpush2.msra.mxu0 0.0
        %730 = vmatprep.subr.mxu0 0.0
        %731 = vmatpush2.msra.mxu0 0.0
        %732 = vmatprep.subr.mxu0 0.0
        %733 = vmatpush2.msra.mxu0 0.0
        %734 = vmatprep.subr.mxu0 0.0
        %735 = vmatpush2.msra.mxu0 0.0
        %736 = vmatprep.subr.mxu0 0.0
        %737 = vmatpush2.msra.mxu0 0.0
        %738 = vmatprep.subr.mxu0 0.0
        %739 = vmatpush2.msra.mxu0 0.0
        %740 = vmatprep.subr.mxu0 0.0
        %741 = vmatpush2.msra.mxu0 0.0
        %742 = vmatprep.mubr.f32.mxu0 0.0
        %743 = vmatmul.mubr.f32.gmra.mxu0 %v676
        %v744 = vpop.f32.mrf.mxu0
        %v745 = vadd.f32 %v673, %v744
        %v746 = vpop.f32.mrf.mxu0
        %747 = vdwg.mxu0
        %749 = vrot.lane.b32.xlu0 %v745, 120
        %v750 = vpop.permute.xlu0 %749
        %752 = vrot.lane.b32.xlu0 %v745, 112
        %v753 = vpop.permute.xlu0 %752
        %755 = vrot.lane.b32.xlu0 %v745, 104
        %v756 = vpop.permute.xlu0 %755
        %758 = vst.msk [vmem:[%s554] sm:$0xff] %vm658, %v745
        %759 = vst.msk [vmem:[%s554 + $0x8] sm:$0xff] %vm658, %v750
        %760 = vst.msk [vmem:[%s554 + $0x10] sm:$0xff] %vm658, %v753
        %761 = vst.msk [vmem:[%s554 + $0x18] sm:$0xff] %vm658, %v756
        %v762 = vld [vmem:[%s491] sm:$0xff]
        %v763 = vld [vmem:[#allocation11] sm:$0xff]
        %v764 = vld [vmem:[#allocation11 + $0x8] sm:$0xff]
        %v765 = vld [vmem:[#allocation11 + $0x10] sm:$0xff]
        %v766 = vld [vmem:[#allocation11 + $0x18] sm:$0xff]
        %v767 = vld [vmem:[%s8] sm:$0x1]
        %v769 = vlaneseq
        %v770 = vshrl.u32 %v769, 7
        %v771 = vsub.s32 0, %v770
        %v772 = vrot.slane %v767, %v771
        %v775 = vsel %vm574, %v762, 0
        %777 = vmatprep.subr.mxu0 0.0
        %778 = vmatpush1.msra.mxu0 0.0
        %779 = vmatprep.subr.mxu0 0.0
        %780 = vmatpush1.msra.mxu0 0.0
        %781 = vmatprep.subr.mxu0 0.0
        %782 = vmatpush1.msra.mxu0 0.0
        %783 = vmatprep.subr.mxu0 0.0
        %784 = vmatpush1.msra.mxu0 0.0
        %785 = vmatprep.subr.mxu0 0.0
        %786 = vmatpush1.msra.mxu0 0.0
        %787 = vmatprep.subr.mxu0 0.0
        %788 = vmatpush1.msra.mxu0 0.0
        %789 = vmatprep.subr.mxu0 0.0
        %790 = vmatpush1.msra.mxu0 0.0
        %791 = vmatprep.subr.mxu0 0.0
        %792 = vmatpush1.msra.mxu0 0.0
        %793 = vmatprep.subr.mxu0 0.0
        %794 = vmatpush1.msra.mxu0 0.0
        %795 = vmatprep.subr.mxu0 0.0
        %796 = vmatpush1.msra.mxu0 0.0
        %797 = vmatprep.subr.mxu0 0.0
        %798 = vmatpush1.msra.mxu0 0.0
        %799 = vmatprep.subr.mxu0 0.0
        %800 = vmatpush1.msra.mxu0 0.0
        %801 = vmatprep.subr.mxu0 0.0
        %802 = vmatpush1.msra.mxu0 %v766
        %803 = vmatprep.subr.mxu0 0.0
        %804 = vmatpush1.msra.mxu0 %v765
        %805 = vmatprep.subr.mxu0 0.0
        %806 = vmatpush1.msra.mxu0 %v764
        %807 = vmatprep.subr.mxu0 0.0
        %808 = vmatpush1.msra.mxu0 %v763
        %809 = vmatprep.subr.mxu0 0.0
        %810 = vmatpush2.msra.mxu0 0.0
        %811 = vmatprep.subr.mxu0 0.0
        %812 = vmatpush2.msra.mxu0 0.0
        %813 = vmatprep.subr.mxu0 0.0
        %814 = vmatpush2.msra.mxu0 0.0
        %815 = vmatprep.subr.mxu0 0.0
        %816 = vmatpush2.msra.mxu0 0.0
        %817 = vmatprep.subr.mxu0 0.0
        %818 = vmatpush2.msra.mxu0 0.0
        %819 = vmatprep.subr.mxu0 0.0
        %820 = vmatpush2.msra.mxu0 0.0
        %821 = vmatprep.subr.mxu0 0.0
        %822 = vmatpush2.msra.mxu0 0.0
        %823 = vmatprep.subr.mxu0 0.0
        %824 = vmatpush2.msra.mxu0 0.0
        %825 = vmatprep.subr.mxu0 0.0
        %826 = vmatpush2.msra.mxu0 0.0
        %827 = vmatprep.subr.mxu0 0.0
        %828 = vmatpush2.msra.mxu0 0.0
        %829 = vmatprep.subr.mxu0 0.0
        %830 = vmatpush2.msra.mxu0 0.0
        %831 = vmatprep.subr.mxu0 0.0
        %832 = vmatpush2.msra.mxu0 0.0
        %833 = vmatprep.subr.mxu0 0.0
        %834 = vmatpush2.msra.mxu0 0.0
        %835 = vmatprep.subr.mxu0 0.0
        %836 = vmatpush2.msra.mxu0 0.0
        %837 = vmatprep.subr.mxu0 0.0
        %838 = vmatpush2.msra.mxu0 0.0
        %839 = vmatprep.subr.mxu0 0.0
        %840 = vmatpush2.msra.mxu0 0.0
        %841 = vmatprep.mubr.f32.mxu0 0.0
        %842 = vmatmul.mubr.f32.gmra.mxu0 %v775
        %v843 = vpop.f32.mrf.mxu0
        %v844 = vadd.f32 %v772, %v843
        %v845 = vpop.f32.mrf.mxu0
        %846 = vdwg.mxu0
        %848 = vrot.lane.b32.xlu0 %v844, 120
        %v849 = vpop.permute.xlu0 %848
        %851 = vrot.lane.b32.xlu0 %v844, 112
        %v852 = vpop.permute.xlu0 %851
        %854 = vrot.lane.b32.xlu0 %v844, 104
        %v855 = vpop.permute.xlu0 %854
        %857 = vst.msk [vmem:[%s561] sm:$0xff] %vm658, %v844
        %858 = vst.msk [vmem:[%s561 + $0x8] sm:$0xff] %vm658, %v849
        %859 = vst.msk [vmem:[%s561 + $0x10] sm:$0xff] %vm658, %v852
        %860 = vst.msk [vmem:[%s561 + $0x18] sm:$0xff] %vm658, %v855
        %s861 = sand.u32 %s269, 1
        %s862 = scalar_lea.sflag [#allocation4], %s861
        %s863 = sand.u32 %s269, 1
        %s864 = smul.addr %s863, 32
        %s865 = scalar_lea.vmem [#allocation13], %s864
        %s866 = sand.u32 %s37, 1
        %s867 = scalar_lea.sflag [#allocation15], %s866
        %s868 = sand.u32 %s297, 1
        %s869 = smul.addr %s868, 32
        %s870 = scalar_lea.vmem [#allocation14], %s869
        %s871 = sand.u32 %s37, 1
        %s872 = scalar_lea.sflag [#allocation15], %s871
        %s873 = sand.u32 %s325, 1
        %s874 = smul.addr %s873, 32
        %s875 = scalar_lea.vmem [#allocation16], %s874
        // Predicated region
        $region81: #{tpu_custom_call.1} parent=55 // pred_check
          %p876 = pneg %p279
        $region82: #{tpu_custom_call.1} parent=55 // pred_check_branch
          %878 = sbr.rel (%p876) target = $region84
        $region83: #{tpu_custom_call.1} parent=55 // pred_region
          %s880 = ssub.s32 512, 512
          %881 = vsyncadd %s862, %s880
          %s882 = smul.addr %s41, 4
          %s883 = sadd.s32 %s42, %s882
          %s884 = smul.addr %s883, 128
          %s885 = scalar_lea.hbm %s9, %s884
          %s886 = sshll.u32 %s865, 4
          %s887 = int_to_ptr.vmem [resolvable:$true] %s886
          %892 = dma.vmem_to_hbm [thread:$0]  %s887, 512, %s885, %s862, 128, 128, 8
        $region84: #{tpu_custom_call.1} parent=55 // pred_fallthru
          _
        // Predicated region
        $region85: #{tpu_custom_call.1} parent=55 // pred_check
          %p893 = pneg %p307
        $region86: #{tpu_custom_call.1} parent=55 // pred_check_branch
          %895 = sbr.rel (%p893) target = $region88
        $region87: #{tpu_custom_call.1} parent=55 // pred_region
          %s897 = ssub.s32 512, 512
          %898 = vsyncadd %s867, %s897
          %s899 = smul.addr %s41, 4
          %s900 = sadd.s32 %s42, %s899
          %s901 = smul.addr %s900, 128
          %s902 = scalar_lea.hbm %s10, %s901
          %s903 = sshll.u32 %s870, 4
          %s904 = int_to_ptr.vmem [resolvable:$true] %s903
          %909 = dma.vmem_to_hbm [thread:$0]  %s904, 512, %s902, %s867, 128, 128, 8
        $region88: #{tpu_custom_call.1} parent=55 // pred_fallthru
          _
        // Predicated region
        $region89: #{tpu_custom_call.1} parent=55 // pred_check
          %p910 = pneg %p335
        $region90: #{tpu_custom_call.1} parent=55 // pred_check_branch
          %912 = sbr.rel (%p910) target = $region92
        $region91: #{tpu_custom_call.1} parent=55 // pred_region
          %s914 = ssub.s32 512, 512
          %915 = vsyncadd %s872, %s914
          %s916 = smul.addr %s41, 4
          %s917 = sadd.s32 %s42, %s916
          %s918 = smul.addr %s917, 128
          %s919 = scalar_lea.hbm %s11, %s918
          %s920 = sshll.u32 %s875, 4
          %s921 = int_to_ptr.vmem [resolvable:$true] %s920
          %926 = dma.vmem_to_hbm [thread:$0]  %s921, 512, %s919, %s872, 128, 128, 8
        $region92: #{tpu_custom_call.1} parent=55 // pred_fallthru
          _
      $region56: #{tpu_custom_call.1} parent=5 // pred_fallthru
        _
      %p927 = scmp.le.s32.totalorder 2, %s32
      // Predicated region
      $region93: #{tpu_custom_call.1} parent=5 // pred_check
        %p928 = pneg %p927
      $region94: #{tpu_custom_call.1} parent=5 // pred_check_branch
        %930 = sbr.rel (%p928) target = $region96
      $region95: #{tpu_custom_call.1} parent=5 // pred_region
        %s931 = ssub.s32 %s32, 2
        // Predicated region
        $region97: #{tpu_custom_call.1} parent=95 // pred_check
          %p932 = pneg %p285
        $region98: #{tpu_custom_call.1} parent=95 // pred_check_branch
          %934 = sbr.rel (%p932) target = $region100
        $region99: #{tpu_custom_call.1} parent=95 // pred_region
          %s935 = sand.u32 %s270, 1
          %s936 = scalar_lea.sflag [#allocation4], %s935
          %s937 = sand.u32 %s270, 1
          %s938 = smul.addr %s937, 32
          %s939 = scalar_lea.vmem [#allocation13], %s938
          %940 = dma.done %s936, 512
        $region100: #{tpu_custom_call.1} parent=95 // pred_fallthru
          _
        // Predicated region
        $region101: #{tpu_custom_call.1} parent=95 // pred_check
          %p941 = pneg %p313
        $region102: #{tpu_custom_call.1} parent=95 // pred_check_branch
          %943 = sbr.rel (%p941) target = $region104
        $region103: #{tpu_custom_call.1} parent=95 // pred_region
          %s944 = sand.u32 %s38, 1
          %s945 = scalar_lea.sflag [#allocation15], %s944
          %s946 = sand.u32 %s298, 1
          %s947 = smul.addr %s946, 32
          %s948 = scalar_lea.vmem [#allocation14], %s947
          %949 = dma.done %s945, 512
        $region104: #{tpu_custom_call.1} parent=95 // pred_fallthru
          _
        // Predicated region
        $region105: #{tpu_custom_call.1} parent=95 // pred_check
          %p950 = pneg %p341
        $region106: #{tpu_custom_call.1} parent=95 // pred_check_branch
          %952 = sbr.rel (%p950) target = $region108
        $region107: #{tpu_custom_call.1} parent=95 // pred_region
          %s953 = sand.u32 %s38, 1
          %s954 = scalar_lea.sflag [#allocation15], %s953
          %s955 = sand.u32 %s326, 1
          %s956 = smul.addr %s955, 32
          %s957 = scalar_lea.vmem [#allocation16], %s956
          %958 = dma.done %s954, 512
        $region108: #{tpu_custom_call.1} parent=95 // pred_fallthru
          _
      $region96: #{tpu_custom_call.1} parent=5 // pred_fallthru
        _
    $region6: #{tpu_custom_call.1} parent=1 // loop_footer
      %s36 = sadd.s32 1, %s32
    $region7: #{tpu_custom_call.1} parent=1 // loop_footer_branch
      %31 = sbr.rel target = $region3
    $region8: #{tpu_custom_call.1} parent=1 // loop_exit
      _
    %959 = vsyncpa [#allocation3], 1
    %s960 = scalar_lea.sflag [#allocation3], 1
    %961 = vsyncpa %s960, 1
    %962 = vsyncpa [#allocation6], 1
    %s963 = scalar_lea.sflag [#allocation6], 1
    %964 = vsyncpa %s963, 1
    %965 = vsyncpa [#allocation9], 1
    %966 = vsyncpa [#allocation12], 1
    %967 = vsyncpa [#allocation4], 1
    %s968 = scalar_lea.sflag [#allocation4], 1
    %969 = vsyncpa %s968, 1
    %970 = vsyncpa [#allocation15], 1
    %s971 = scalar_lea.sflag [#allocation15], 1
    %972 = vsyncpa %s971, 1

// kernel: tpu_custom_call.1
$region0: #{tpu_custom_call.1}
  #allocation0 [shape = 'u32[]', space=smem, size = 0x4, offset = 0x4, fixed_abs, tag = 'smem constant byte address 0x4 - core index']
  #allocation1 [shape = 'u32[144,128]{1,0:T(1,128)}', space=vmem, size = 0x12000, scoped, tag = 'internal scratch']
  %s0 = inlined_call_operand.hbm [shape: f32[2,8,32], index: 0, kind: input, shape index: {}]
  %s1 = inlined_call_operand.hbm [shape: f32[2,8,32], index: 1, kind: input, shape index: {}]
  %s2 = inlined_call_operand.hbm [shape: f32[2,8,32], index: 2, kind: input, shape index: {}]
  %s3 = inlined_call_operand.hbm [shape: f32[32,32], index: 3, kind: input, shape index: {}]
  %s4 = inlined_call_operand.vmem [shape: f32[1,32], index: 4, kind: input, shape index: {}]
  %s5 = inlined_call_operand.hbm [shape: f32[32,32], index: 5, kind: input, shape index: {}]
  %s6 = inlined_call_operand.vmem [shape: f32[1,32], index: 6, kind: input, shape index: {}]
  %s7 = inlined_call_operand.hbm [shape: f32[32,32], index: 7, kind: input, shape index: {}]
  %s8 = inlined_call_operand.vmem [shape: f32[1,32], index: 8, kind: input, shape index: {}]
  %s9 = inlined_call_operand.hbm [shape: f32[2,4,8,8], index: 9, kind: output, shape index: {0}]
  %s10 = inlined_call_operand.hbm [shape: f32[2,4,8,8], index: 10, kind: output, shape index: {1}]
  %s11 = inlined_call_operand.hbm [shape: f32[2,4,8,8], index: 11, kind: output, shape index: {2}]
  %12 = xla_tuple %s9, %s10, %s11
  %s13 = sld [smem:[#allocation0]]
  $region109: #{tpu_custom_call.1} parent=0
    _
  %s15 = ssub.s32 1, %s13
  %s16 = scalar_select 0, %s15, %s13
  $region1: #{tpu_custom_call.1} parent=0
    #allocation2 [shape = 'u8[8192]{0}', space=vmem, size = 0x2000, scoped, tag = 'input window, operand 0']
    #allocation3 [shape = 's32[2]{0}', space=sflag, size = 0x8, scoped, tag = 'scoped memory for tpu_custom_call.1']
    #allocation4 [shape = 's32[2]{0}', space=sflag, size = 0x8, scoped, tag = 'scoped memory for tpu_custom_call.1']
    #allocation5 [shape = 'u8[8192]{0}', space=vmem, size = 0x2000, scoped, tag = 'input window, operand 1']
    #allocation6 [shape = 's32[2]{0}', space=sflag, size = 0x8, scoped, tag = 'scoped memory for tpu_custom_call.1']
    #allocation7 [shape = 'u8[8192]{0}', space=vmem, size = 0x2000, scoped, tag = 'input window, operand 2']
    #allocation8 [shape = 'u8[16384]{0}', space=vmem, size = 0x4000, scoped, tag = 'input window, operand 3, single buffered']
    #allocation9 [shape = 's32[1]{0}', space=sflag, size = 0x4, scoped, tag = 'scoped memory for tpu_custom_call.1']
    #allocation10 [shape = 'u8[16384]{0}', space=vmem, size = 0x4000, scoped, tag = 'input window, operand 5, single buffered']
    #allocation11 [shape = 'u8[16384]{0}', space=vmem, size = 0x4000, scoped, tag = 'input window, operand 7, single buffered']
    #allocation12 [shape = 's32[1]{0}', space=sflag, size = 0x4, scoped, tag = 'scoped memory for tpu_custom_call.1']
    #allocation13 [shape = 'u8[32768]{0}', space=vmem, size = 0x8000, scoped, tag = 'output window, operand 0']
    #allocation14 [shape = 'u8[32768]{0}', space=vmem, size = 0x8000, scoped, tag = 'output window, operand 1']
    #allocation15 [shape = 's32[2]{0}', space=sflag, size = 0x8, scoped, tag = 'scoped memory for tpu_custom_call.1']
    #allocation16 [shape = 'u8[32768]{0}', space=vmem, size = 0x8000, scoped, tag = 'output window, operand 2']
    %17 = vsyncpa [#allocation3], 0
    %s18 = scalar_lea.sflag [#allocation3], 1
    %19 = vsyncpa %s18, 0
    %20 = vsyncpa [#allocation6], 0
    %s21 = scalar_lea.sflag [#allocation6], 1
    %22 = vsyncpa %s21, 0
    %23 = vsyncpa [#allocation9], 0
    %24 = vsyncpa [#allocation12], 0
    %25 = vsyncpa [#allocation4], 0
    %s26 = scalar_lea.sflag [#allocation4], 1
    %27 = vsyncpa %s26, 0
    %28 = vsyncpa [#allocation15], 0
    %s29 = scalar_lea.sflag [#allocation15], 1
    %30 = vsyncpa %s29, 0
    loop: start=0, step=1, limit=4
    $region2: #{tpu_custom_call.1} parent=1 // loop_pre_header
      _
    $region3: #{tpu_custom_call.1} parent=1 // loop_header
      %s32 = sphi 0, %s36
      %p33 = scmp.ge.s32.totalorder %s32, 4
      %s39 = sphi 0, %s51
      %s40 = sphi 0, %s47
      %s41 = sphi 0, %s39
      %s42 = sphi 0, %s40
      %s43 = sphi 0, %s41
      %s44 = sphi 0, %s42
      %s56 = sphi 0, %s58
      %s59 = sphi 0, %s56
      %s60 = sphi 0, %s59
      %s76 = sphi 0, %s60
      %s84 = sphi 0, %s86
      %s87 = sphi 0, %s84
      %s88 = sphi 0, %s87
      %s104 = sphi 0, %s88
      %s112 = sphi 0, %s114
      %s115 = sphi 0, %s112
      %s116 = sphi 0, %s115
      %s132 = sphi 0, %s116
      %s136 = sphi 0, %s136
      %s138 = sphi 0, %s136
      %s139 = sphi 0, %s138
      %s153 = sphi 0, %s139
      %s157 = sphi 0, %s157
      %s159 = sphi 0, %s157
      %s160 = sphi 0, %s159
      %s174 = sphi 0, %s160
      %s178 = sphi 0, %s178
      %s180 = sphi 0, %s178
      %s181 = sphi 0, %s180
      %s195 = sphi 0, %s181
      %s199 = sphi 0, %s199
      %s201 = sphi 0, %s199
      %s202 = sphi 0, %s201
      %s216 = sphi 0, %s202
      %s220 = sphi 0, %s220
      %s222 = sphi 0, %s220
      %s223 = sphi 0, %s222
      %s237 = sphi 0, %s223
      %s241 = sphi 0, %s241
      %s243 = sphi 0, %s241
      %s244 = sphi 0, %s243
      %s258 = sphi 0, %s244
      %s266 = sphi 0, %s268
      %s269 = sphi 0, %s266
      %s270 = sphi 0, %s269
      %s286 = sphi 0, %s270
      %s294 = sphi 0, %s296
      %s297 = sphi 0, %s294
      %s298 = sphi 0, %s297
      %s314 = sphi 0, %s298
      %s322 = sphi 0, %s324
      %s325 = sphi 0, %s322
      %s326 = sphi 0, %s325
      %s342 = sphi 0, %s326
    $region4: #{tpu_custom_call.1} parent=1 // loop_header_branch
      %35 = sbr.rel (%p33) target = $region8
    $region5: #{tpu_custom_call.1} parent=1 // loop_body
      %s37 = ssub.s32 %s32, 1
      %s38 = ssub.s32 %s32, 2
      %s45 = sadd.s32 1, %s40
      %p46 = scmp.ge.s32.totalorder %s45, 1
      %s47 = scalar_select %p46, 0, %s45
      %s48 = sadd.s32 1, %s39
      %s49 = scalar_select %p46, %s48, %s39
      %p50 = scmp.ge.s32.totalorder %s49, 2
      %s51 = scalar_select %p50, 0, %s49
      %s52 = ssub.s32 %s39, %s51
      %s53 = ssub.s32 %s40, %s47
      %s54 = sor.u32 %s52, %s53
      %p55 = scmp.eq.s32.totalorder %s54, 0
      %s57 = sadd.s32 %s56, 1
      %s58 = scalar_select %p55, %s56, %s57
      %p61 = pneg %p55
      %p62 = scmp.eq.s32.totalorder %s32, 1
      %p63 = por %p61, %p62
      %p64 = scmp.ne.s32.totalorder %s56, %s59
      %p65 = scmp.eq.s32.totalorder %s32, 0
      %p66 = por %p64, %p65
      %p67 = scmp.ne.s32.totalorder %s56, %s59
      %p68 = scmp.eq.s32.totalorder %s37, 1
      %p69 = por %p67, %p68
      %p70 = scmp.ne.s32.totalorder %s59, %s60
      %p71 = scmp.eq.s32.totalorder %s37, 0
      %p72 = por %p70, %p71
      %p73 = scmp.ne.s32.totalorder %s59, %s60
      %p74 = scmp.eq.s32.totalorder %s38, 1
      %p75 = por %p73, %p74
      %p77 = scmp.ne.s32.totalorder %s60, %s76
      %p78 = scmp.eq.s32.totalorder %s38, 0
      %p79 = por %p77, %p78
      %s80 = ssub.s32 %s39, %s51
      %s81 = ssub.s32 %s40, %s47
      %s82 = sor.u32 %s80, %s81
      %p83 = scmp.eq.s32.totalorder %s82, 0
      %s85 = sadd.s32 %s84, 1
      %s86 = scalar_select %p83, %s84, %s85
      %p89 = pneg %p83
      %p90 = scmp.eq.s32.totalorder %s32, 1
      %p91 = por %p89, %p90
      %p92 = scmp.ne.s32.totalorder %s84, %s87
      %p93 = scmp.eq.s32.totalorder %s32, 0
      %p94 = por %p92, %p93
      %p95 = scmp.ne.s32.totalorder %s84, %s87
      %p96 = scmp.eq.s32.totalorder %s37, 1
      %p97 = por %p95, %p96
      %p98 = scmp.ne.s32.totalorder %s87, %s88
      %p99 = scmp.eq.s32.totalorder %s37, 0
      %p100 = por %p98, %p99
      %p101 = scmp.ne.s32.totalorder %s87, %s88
      %p102 = scmp.eq.s32.totalorder %s38, 1
      %p103 = por %p101, %p102
      %p105 = scmp.ne.s32.totalorder %s88, %s104
      %p106 = scmp.eq.s32.totalorder %s38, 0
      %p107 = por %p105, %p106
      %s108 = ssub.s32 %s39, %s51
      %s109 = ssub.s32 %s40, %s47
      %s110 = sor.u32 %s108, %s109
      %p111 = scmp.eq.s32.totalorder %s110, 0
      %s113 = sadd.s32 %s112, 1
      %s114 = scalar_select %p111, %s112, %s113
      %p117 = pneg %p111
      %p118 = scmp.eq.s32.totalorder %s32, 1
      %p119 = por %p117, %p118
      %p120 = scmp.ne.s32.totalorder %s112, %s115
      %p121 = scmp.eq.s32.totalorder %s32, 0
      %p122 = por %p120, %p121
      %p123 = scmp.ne.s32.totalorder %s112, %s115
      %p124 = scmp.eq.s32.totalorder %s37, 1
      %p125 = por %p123, %p124
      %p126 = scmp.ne.s32.totalorder %s115, %s116
      %p127 = scmp.eq.s32.totalorder %s37, 0
      %p128 = por %p126, %p127
      %p129 = scmp.ne.s32.totalorder %s115, %s116
      %p130 = scmp.eq.s32.totalorder %s38, 1
      %p131 = por %p129, %p130
      %p133 = scmp.ne.s32.totalorder %s116, %s132
      %p134 = scmp.eq.s32.totalorder %s38, 0
      %p135 = por %p133, %p134
      %s137 = sadd.s32 %s136, 1
      %p140 = scmp.eq.s32.totalorder %s32, 1
      %p141 = scmp.ne.s32.totalorder %s136, %s138
      %p142 = scmp.eq.s32.totalorder %s32, 0
      %p143 = por %p141, %p142
      %p144 = scmp.ne.s32.totalorder %s136, %s138
      %p145 = scmp.eq.s32.totalorder %s37, 1
      %p146 = por %p144, %p145
      %p147 = scmp.ne.s32.totalorder %s138, %s139
      %p148 = scmp.eq.s32.totalorder %s37, 0
      %p149 = por %p147, %p148
      %p150 = scmp.ne.s32.totalorder %s138, %s139
      %p151 = scmp.eq.s32.totalorder %s38, 1
      %p152 = por %p150, %p151
      %p154 = scmp.ne.s32.totalorder %s139, %s153
      %p155 = scmp.eq.s32.totalorder %s38, 0
      %p156 = por %p154, %p155
      %s158 = sadd.s32 %s157, 1
      %p161 = scmp.eq.s32.totalorder %s32, 1
      %p162 = scmp.ne.s32.totalorder %s157, %s159
      %p163 = scmp.eq.s32.totalorder %s32, 0
      %p164 = por %p162, %p163
      %p165 = scmp.ne.s32.totalorder %s157, %s159
      %p166 = scmp.eq.s32.totalorder %s37, 1
      %p167 = por %p165, %p166
      %p168 = scmp.ne.s32.totalorder %s159, %s160
      %p169 = scmp.eq.s32.totalorder %s37, 0
      %p170 = por %p168, %p169
      %p171 = scmp.ne.s32.totalorder %s159, %s160
      %p172 = scmp.eq.s32.totalorder %s38, 1
      %p173 = por %p171, %p172
      %p175 = scmp.ne.s32.totalorder %s160, %s174
      %p176 = scmp.eq.s32.totalorder %s38, 0
      %p177 = por %p175, %p176
      %s179 = sadd.s32 %s178, 1
      %p182 = scmp.eq.s32.totalorder %s32, 1
      %p183 = scmp.ne.s32.totalorder %s178, %s180
      %p184 = scmp.eq.s32.totalorder %s32, 0
      %p185 = por %p183, %p184
      %p186 = scmp.ne.s32.totalorder %s178, %s180
      %p187 = scmp.eq.s32.totalorder %s37, 1
      %p188 = por %p186, %p187
      %p189 = scmp.ne.s32.totalorder %s180, %s181
      %p190 = scmp.eq.s32.totalorder %s37, 0
      %p191 = por %p189, %p190
      %p192 = scmp.ne.s32.totalorder %s180, %s181
      %p193 = scmp.eq.s32.totalorder %s38, 1
      %p194 = por %p192, %p193
      %p196 = scmp.ne.s32.totalorder %s181, %s195
      %p197 = scmp.eq.s32.totalorder %s38, 0
      %p198 = por %p196, %p197
      %s200 = sadd.s32 %s199, 1
      %p203 = scmp.eq.s32.totalorder %s32, 1
      %p204 = scmp.ne.s32.totalorder %s199, %s201
      %p205 = scmp.eq.s32.totalorder %s32, 0
      %p206 = por %p204, %p205
      %p207 = scmp.ne.s32.totalorder %s199, %s201
      %p208 = scmp.eq.s32.totalorder %s37, 1
      %p209 = por %p207, %p208
      %p210 = scmp.ne.s32.totalorder %s201, %s202
      %p211 = scmp.eq.s32.totalorder %s37, 0
      %p212 = por %p210, %p211
      %p213 = scmp.ne.s32.totalorder %s201, %s202
      %p214 = scmp.eq.s32.totalorder %s38, 1
      %p215 = por %p213, %p214
      %p217 = scmp.ne.s32.totalorder %s202, %s216
      %p218 = scmp.eq.s32.totalorder %s38, 0
      %p219 = por %p217, %p218
      %s221 = sadd.s32 %s220, 1
      %p224 = scmp.eq.s32.totalorder %s32, 1
      %p225 = scmp.ne.s32.totalorder %s220, %s222
      %p226 = scmp.eq.s32.totalorder %s32, 0
      %p227 = por %p225, %p226
      %p228 = scmp.ne.s32.totalorder %s220, %s222
      %p229 = scmp.eq.s32.totalorder %s37, 1
      %p230 = por %p228, %p229
      %p231 = scmp.ne.s32.totalorder %s222, %s223
      %p232 = scmp.eq.s32.totalorder %s37, 0
      %p233 = por %p231, %p232
      %p234 = scmp.ne.s32.totalorder %s222, %s223
      %p235 = scmp.eq.s32.totalorder %s38, 1
      %p236 = por %p234, %p235
      %p238 = scmp.ne.s32.totalorder %s223, %s237
      %p239 = scmp.eq.s32.totalorder %s38, 0
      %p240 = por %p238, %p239
      %s242 = sadd.s32 %s241, 1
      %p245 = scmp.eq.s32.totalorder %s32, 1
      %p246 = scmp.ne.s32.totalorder %s241, %s243
      %p247 = scmp.eq.s32.totalorder %s32, 0
      %p248 = por %p246, %p247
      %p249 = scmp.ne.s32.totalorder %s241, %s243
      %p250 = scmp.eq.s32.totalorder %s37, 1
      %p251 = por %p249, %p250
      %p252 = scmp.ne.s32.totalorder %s243, %s244
      %p253 = scmp.eq.s32.totalorder %s37, 0
      %p254 = por %p252, %p253
      %p255 = scmp.ne.s32.totalorder %s243, %s244
      %p256 = scmp.eq.s32.totalorder %s38, 1
      %p257 = por %p255, %p256
      %p259 = scmp.ne.s32.totalorder %s244, %s258
      %p260 = scmp.eq.s32.totalorder %s38, 0
      %p261 = por %p259, %p260
      %s262 = ssub.s32 %s39, %s51
      %s263 = ssub.s32 %s40, %s47
      %s264 = sor.u32 %s262, %s263
      %p265 = scmp.eq.s32.totalorder %s264, 0
      %s267 = sadd.s32 %s266, 1
      %s268 = scalar_select %p265, %s266, %s267
      %p271 = pneg %p265
      %p272 = scmp.eq.s32.totalorder %s32, 1
      %p273 = por %p271, %p272
      %p274 = scmp.ne.s32.totalorder %s266, %s269
      %p275 = scmp.eq.s32.totalorder %s32, 0
      %p276 = por %p274, %p275
      %p277 = scmp.ne.s32.totalorder %s266, %s269
      %p278 = scmp.eq.s32.totalorder %s37, 1
      %p279 = por %p277, %p278
      %p280 = scmp.ne.s32.totalorder %s269, %s270
      %p281 = scmp.eq.s32.totalorder %s37, 0
      %p282 = por %p280, %p281
      %p283 = scmp.ne.s32.totalorder %s269, %s270
      %p284 = scmp.eq.s32.totalorder %s38, 1
      %p285 = por %p283, %p284
      %p287 = scmp.ne.s32.totalorder %s270, %s286
      %p288 = scmp.eq.s32.totalorder %s38, 0
      %p289 = por %p287, %p288
      %s290 = ssub.s32 %s39, %s51
      %s291 = ssub.s32 %s40, %s47
      %s292 = sor.u32 %s290, %s291
      %p293 = scmp.eq.s32.totalorder %s292, 0
      %s295 = sadd.s32 %s294, 1
      %s296 = scalar_select %p293, %s294, %s295
      %p299 = pneg %p293
      %p300 = scmp.eq.s32.totalorder %s32, 1
      %p301 = por %p299, %p300
      %p302 = scmp.ne.s32.totalorder %s294, %s297
      %p303 = scmp.eq.s32.totalorder %s32, 0
      %p304 = por %p302, %p303
      %p305 = scmp.ne.s32.totalorder %s294, %s297
      %p306 = scmp.eq.s32.totalorder %s37, 1
      %p307 = por %p305, %p306
      %p308 = scmp.ne.s32.totalorder %s297, %s298
      %p309 = scmp.eq.s32.totalorder %s37, 0
      %p310 = por %p308, %p309
      %p311 = scmp.ne.s32.totalorder %s297, %s298
      %p312 = scmp.eq.s32.totalorder %s38, 1
      %p313 = por %p311, %p312
      %p315 = scmp.ne.s32.totalorder %s298, %s314
      %p316 = scmp.eq.s32.totalorder %s38, 0
      %p317 = por %p315, %p316
      %s318 = ssub.s32 %s39, %s51
      %s319 = ssub.s32 %s40, %s47
      %s320 = sor.u32 %s318, %s319
      %p321 = scmp.eq.s32.totalorder %s320, 0
      %s323 = sadd.s32 %s322, 1
      %s324 = scalar_select %p321, %s322, %s323
      %p327 = pneg %p321
      %p328 = scmp.eq.s32.totalorder %s32, 1
      %p329 = por %p327, %p328
      %p330 = scmp.ne.s32.totalorder %s322, %s325
      %p331 = scmp.eq.s32.totalorder %s32, 0
      %p332 = por %p330, %p331
      %p333 = scmp.ne.s32.totalorder %s322, %s325
      %p334 = scmp.eq.s32.totalorder %s37, 1
      %p335 = por %p333, %p334
      %p336 = scmp.ne.s32.totalorder %s325, %s326
      %p337 = scmp.eq.s32.totalorder %s37, 0
      %p338 = por %p336, %p337
      %p339 = scmp.ne.s32.totalorder %s325, %s326
      %p340 = scmp.eq.s32.totalorder %s38, 1
      %p341 = por %p339, %p340
      %p343 = scmp.ne.s32.totalorder %s326, %s342
      %p344 = scmp.eq.s32.totalorder %s38, 0
      %p345 = por %p343, %p344
      %p346 = scmp.le.s32.totalorder 1, %s32
      %p347 = scmp.lt.s32.totalorder %s32, 3
      %p348 = pnand %p346, %p347
      %p349 = pneg %p348
      // Predicated region
      $region9: #{tpu_custom_call.1} parent=5 // pred_check
        _
      $region10: #{tpu_custom_call.1} parent=5 // pred_check_branch
        %351 = sbr.rel (%p348) target = $region12
      $region11: #{tpu_custom_call.1} parent=5 // pred_region
        %s352 = ssub.s32 %s32, 1
        // Predicated region
        $region13: #{tpu_custom_call.1} parent=11 // pred_check
          %p353 = pneg %p149
        $region14: #{tpu_custom_call.1} parent=11 // pred_check_branch
          %355 = sbr.rel (%p353) target = $region16
        $region15: #{tpu_custom_call.1} parent=11 // pred_region
          %s357 = ssub.s32 512, 512
          %358 = vsyncadd [#allocation9], %s357
          %s359 = sshll.u32 [#allocation8], 4
          %s360 = int_to_ptr.vmem [resolvable:$true] %s359
          %365 = dma.hbm_to_vmem [thread:$0]  %s3, 512, %s360, [#allocation9], 128, 128, 8
        $region16: #{tpu_custom_call.1} parent=11 // pred_fallthru
          _
        // Predicated region
        $region17: #{tpu_custom_call.1} parent=11 // pred_check
          %p366 = pneg %p170
        $region18: #{tpu_custom_call.1} parent=11 // pred_check_branch
          %368 = sbr.rel (%p366) target = $region20
        $region19: #{tpu_custom_call.1} parent=11 // pred_region
          _
        $region20: #{tpu_custom_call.1} parent=11 // pred_fallthru
          _
        // Predicated region
        $region21: #{tpu_custom_call.1} parent=11 // pred_check
          %p369 = pneg %p191
        $region22: #{tpu_custom_call.1} parent=11 // pred_check_branch
          %371 = sbr.rel (%p369) target = $region24
        $region23: #{tpu_custom_call.1} parent=11 // pred_region
          %s373 = ssub.s32 512, 512
          %374 = vsyncadd [#allocation9], %s373
          %s375 = sshll.u32 [#allocation10], 4
          %s376 = int_to_ptr.vmem [resolvable:$true] %s375
          %381 = dma.hbm_to_vmem [thread:$0]  %s5, 512, %s376, [#allocation9], 128, 128, 8
        $region24: #{tpu_custom_call.1} parent=11 // pred_fallthru
          _
        // Predicated region
        $region25: #{tpu_custom_call.1} parent=11 // pred_check
          %p382 = pneg %p212
        $region26: #{tpu_custom_call.1} parent=11 // pred_check_branch
          %384 = sbr.rel (%p382) target = $region28
        $region27: #{tpu_custom_call.1} parent=11 // pred_region
          _
        $region28: #{tpu_custom_call.1} parent=11 // pred_fallthru
          _
        // Predicated region
        $region29: #{tpu_custom_call.1} parent=11 // pred_check
          %p385 = pneg %p233
        $region30: #{tpu_custom_call.1} parent=11 // pred_check_branch
          %387 = sbr.rel (%p385) target = $region32
        $region31: #{tpu_custom_call.1} parent=11 // pred_region
          %s389 = ssub.s32 512, 512
          %390 = vsyncadd [#allocation12], %s389
          %s391 = sshll.u32 [#allocation11], 4
          %s392 = int_to_ptr.vmem [resolvable:$true] %s391
          %397 = dma.hbm_to_vmem [thread:$0]  %s7, 512, %s392, [#allocation12], 128, 128, 8
        $region32: #{tpu_custom_call.1} parent=11 // pred_fallthru
          _
        // Predicated region
        $region33: #{tpu_custom_call.1} parent=11 // pred_check
          %p398 = pneg %p254
        $region34: #{tpu_custom_call.1} parent=11 // pred_check_branch
          %400 = sbr.rel (%p398) target = $region36
        $region35: #{tpu_custom_call.1} parent=11 // pred_region
          _
        $region36: #{tpu_custom_call.1} parent=11 // pred_fallthru
          _
      $region12: #{tpu_custom_call.1} parent=5 // pred_fallthru
        _
      %p401 = scmp.lt.s32.totalorder %s32, 2
      // Predicated region
      $region37: #{tpu_custom_call.1} parent=5 // pred_check
        %p402 = pneg %p401
      $region38: #{tpu_custom_call.1} parent=5 // pred_check_branch
        %404 = sbr.rel (%p402) target = $region40
      $region39: #{tpu_custom_call.1} parent=5 // pred_region
        // Predicated region
        $region41: #{tpu_custom_call.1} parent=39 // pred_check
          %p405 = pneg %p66
        $region42: #{tpu_custom_call.1} parent=39 // pred_check_branch
          %407 = sbr.rel (%p405) target = $region44
        $region43: #{tpu_custom_call.1} parent=39 // pred_region
          %s408 = sand.u32 %s56, 1
          %s409 = scalar_lea.sflag [#allocation3], %s408
          %s410 = sand.u32 %s56, 1
          %s411 = smul.addr %s410, 8
          %s412 = scalar_lea.vmem [#allocation2], %s411
          %s414 = ssub.s32 128, 128
          %415 = vsyncadd %s409, %s414
          %s416 = sadd.s32 %s40, %s39
          %s417 = smul.addr %s416, 128
          %s418 = scalar_lea.hbm %s0, %s417
          %s420 = sshll.u32 %s412, 4
          %s421 = int_to_ptr.vmem [resolvable:$true] %s420
          %423 = dma.hbm_to_vmem [thread:$0]  %s418, 128, %s421, %s409
        $region44: #{tpu_custom_call.1} parent=39 // pred_fallthru
          _
        // Predicated region
        $region45: #{tpu_custom_call.1} parent=39 // pred_check
          %p424 = pneg %p94
        $region46: #{tpu_custom_call.1} parent=39 // pred_check_branch
          %426 = sbr.rel (%p424) target = $region48
        $region47: #{tpu_custom_call.1} parent=39 // pred_region
          %s427 = sand.u32 %s32, 1
          %s428 = scalar_lea.sflag [#allocation6], %s427
          %s429 = sand.u32 %s84, 1
          %s430 = smul.addr %s429, 8
          %s431 = scalar_lea.vmem [#allocation5], %s430
          %s433 = ssub.s32 128, 128
          %434 = vsyncadd %s428, %s433
          %s435 = sadd.s32 %s40, %s39
          %s436 = smul.addr %s435, 128
          %s437 = scalar_lea.hbm %s1, %s436
          %s439 = sshll.u32 %s431, 4
          %s440 = int_to_ptr.vmem [resolvable:$true] %s439
          %442 = dma.hbm_to_vmem [thread:$0]  %s437, 128, %s440, %s428
        $region48: #{tpu_custom_call.1} parent=39 // pred_fallthru
          _
        // Predicated region
        $region49: #{tpu_custom_call.1} parent=39 // pred_check
          %p443 = pneg %p122
        $region50: #{tpu_custom_call.1} parent=39 // pred_check_branch
          %445 = sbr.rel (%p443) target = $region52
        $region51: #{tpu_custom_call.1} parent=39 // pred_region
          %s446 = sand.u32 %s32, 1
          %s447 = scalar_lea.sflag [#allocation6], %s446
          %s448 = sand.u32 %s112, 1
          %s449 = smul.addr %s448, 8
          %s450 = scalar_lea.vmem [#allocation7], %s449
          %s452 = ssub.s32 128, 128
          %453 = vsyncadd %s447, %s452
          %s454 = sadd.s32 %s40, %s39
          %s455 = smul.addr %s454, 128
          %s456 = scalar_lea.hbm %s2, %s455
          %s458 = sshll.u32 %s450, 4
          %s459 = int_to_ptr.vmem [resolvable:$true] %s458
          %461 = dma.hbm_to_vmem [thread:$0]  %s456, 128, %s459, %s447
        $region52: #{tpu_custom_call.1} parent=39 // pred_fallthru
          _
      $region40: #{tpu_custom_call.1} parent=5 // pred_fallthru
        _
      %p462 = scmp.le.s32.totalorder 1, %s32
      %p463 = scmp.lt.s32.totalorder %s32, 3
      %p464 = pnand %p462, %p463
      %p465 = pneg %p464
      // Predicated region
      $region53: #{tpu_custom_call.1} parent=5 // pred_check
        _
      $region54: #{tpu_custom_call.1} parent=5 // pred_check_branch
        %467 = sbr.rel (%p464) target = $region56
      $region55: #{tpu_custom_call.1} parent=5 // pred_region
        %s468 = ssub.s32 %s32, 1
        %s469 = sand.u32 %s59, 1
        %s470 = scalar_lea.sflag [#allocation3], %s469
        %s471 = sand.u32 %s59, 1
        %s472 = smul.addr %s471, 8
        %s473 = scalar_lea.vmem [#allocation2], %s472
        // Predicated region
        $region57: #{tpu_custom_call.1} parent=55 // pred_check
          %p474 = pneg %p72
        $region58: #{tpu_custom_call.1} parent=55 // pred_check_branch
          %476 = sbr.rel (%p474) target = $region60
        $region59: #{tpu_custom_call.1} parent=55 // pred_region
          %477 = dma.done %s470, 128
        $region60: #{tpu_custom_call.1} parent=55 // pred_fallthru
          _
        %s478 = sand.u32 %s37, 1
        %s479 = scalar_lea.sflag [#allocation6], %s478
        %s480 = sand.u32 %s87, 1
        %s481 = smul.addr %s480, 8
        %s482 = scalar_lea.vmem [#allocation5], %s481
        // Predicated region
        $region61: #{tpu_custom_call.1} parent=55 // pred_check
          %p483 = pneg %p100
        $region62: #{tpu_custom_call.1} parent=55 // pred_check_branch
          %485 = sbr.rel (%p483) target = $region64
        $region63: #{tpu_custom_call.1} parent=55 // pred_region
          %486 = dma.done %s479, 128
        $region64: #{tpu_custom_call.1} parent=55 // pred_fallthru
          _
        %s487 = sand.u32 %s37, 1
        %s488 = scalar_lea.sflag [#allocation6], %s487
        %s489 = sand.u32 %s115, 1
        %s490 = smul.addr %s489, 8
        %s491 = scalar_lea.vmem [#allocation7], %s490
        // Predicated region
        $region65: #{tpu_custom_call.1} parent=55 // pred_check
          %p492 = pneg %p128
        $region66: #{tpu_custom_call.1} parent=55 // pred_check_branch
          %494 = sbr.rel (%p492) target = $region68
        $region67: #{tpu_custom_call.1} parent=55 // pred_region
          %495 = dma.done %s488, 128
        $region68: #{tpu_custom_call.1} parent=55 // pred_fallthru
          _
        // Predicated region
        $region69: #{tpu_custom_call.1} parent=55 // pred_check
          %p496 = pneg %p149
        $region70: #{tpu_custom_call.1} parent=55 // pred_check_branch
          %498 = sbr.rel (%p496) target = $region72
        $region71: #{tpu_custom_call.1} parent=55 // pred_region
          %499 = dma.done [#allocation9], 512
        $region72: #{tpu_custom_call.1} parent=55 // pred_fallthru
          _
        // Predicated region
        $region73: #{tpu_custom_call.1} parent=55 // pred_check
          %p500 = pneg %p191
        $region74: #{tpu_custom_call.1} parent=55 // pred_check_branch
          %502 = sbr.rel (%p500) target = $region76
        $region75: #{tpu_custom_call.1} parent=55 // pred_region
          %503 = dma.done [#allocation9], 512
        $region76: #{tpu_custom_call.1} parent=55 // pred_fallthru
          _
        // Predicated region
        $region77: #{tpu_custom_call.1} parent=55 // pred_check
          %p504 = pneg %p233
        $region78: #{tpu_custom_call.1} parent=55 // pred_check_branch
          %506 = sbr.rel (%p504) target = $region80
        $region79: #{tpu_custom_call.1} parent=55 // pred_region
          %507 = dma.done [#allocation12], 512
        $region80: #{tpu_custom_call.1} parent=55 // pred_fallthru
          _
        %s508 = sand.u32 %s59, 1
        %s509 = scalar_lea.sflag [#allocation3], %s508
        %s510 = sand.u32 %s59, 1
        %s511 = smul.addr %s510, 8
        %s512 = scalar_lea.vmem [#allocation2], %s511
        %p513 = pneg %p72
        %p514 = pneg %p69
        %s515 = sand.u32 %s37, 1
        %s516 = scalar_lea.sflag [#allocation6], %s515
        %s517 = sand.u32 %s87, 1
        %s518 = smul.addr %s517, 8
        %s519 = scalar_lea.vmem [#allocation5], %s518
        %p520 = pneg %p100
        %p521 = pneg %p97
        %s522 = sand.u32 %s37, 1
        %s523 = scalar_lea.sflag [#allocation6], %s522
        %s524 = sand.u32 %s115, 1
        %s525 = smul.addr %s524, 8
        %s526 = scalar_lea.vmem [#allocation7], %s525
        %p527 = pneg %p128
        %p528 = pneg %p125
        %p529 = pneg %p149
        %p530 = pneg %p146
        %p531 = pneg %p170
        %p532 = pneg %p167
        %p533 = pneg %p191
        %p534 = pneg %p188
        %p535 = pneg %p212
        %p536 = pneg %p209
        %p537 = pneg %p233
        %p538 = pneg %p230
        %p539 = pneg %p254
        %p540 = pneg %p251
        %p541 = pneg %p282
        %p542 = pneg %p279
        %s543 = sand.u32 %s269, 1
        %s544 = scalar_lea.sflag [#allocation4], %s543
        %s545 = sand.u32 %s269, 1
        %s546 = smul.addr %s545, 32
        %s547 = scalar_lea.vmem [#allocation13], %s546
        %p548 = pneg %p310
        %p549 = pneg %p307
        %s550 = sand.u32 %s37, 1
        %s551 = scalar_lea.sflag [#allocation15], %s550
        %s552 = sand.u32 %s297, 1
        %s553 = smul.addr %s552, 32
        %s554 = scalar_lea.vmem [#allocation14], %s553
        %p555 = pneg %p338
        %p556 = pneg %p335
        %s557 = sand.u32 %s37, 1
        %s558 = scalar_lea.sflag [#allocation15], %s557
        %s559 = sand.u32 %s325, 1
        %s560 = smul.addr %s559, 32
        %s561 = scalar_lea.vmem [#allocation16], %s560
        %v562 = vld [vmem:[%s473] sm:$0xff]
        %v563 = vld [vmem:[#allocation8] sm:$0xff]
        %v564 = vld [vmem:[#allocation8 + $0x8] sm:$0xff]
        %v565 = vld [vmem:[#allocation8 + $0x10] sm:$0xff]
        %v566 = vld [vmem:[#allocation8 + $0x18] sm:$0xff]
        %v567 = vld [vmem:[%s4] sm:$0x1]
        %v569 = vlaneseq
        %v570 = vshrl.u32 %v569, 7
        %v571 = vsub.s32 0, %v570
        %v572 = vrot.slane %v567, %v571
        %vm574 = vcmask 261120
        %v576 = vsel %vm574, %v562, 0
        %578 = vmatprep.subr.mxu0 0.0
        %579 = vmatpush1.msra.mxu0 0.0
        %580 = vmatprep.subr.mxu0 0.0
        %581 = vmatpush1.msra.mxu0 0.0
        %582 = vmatprep.subr.mxu0 0.0
        %583 = vmatpush1.msra.mxu0 0.0
        %584 = vmatprep.subr.mxu0 0.0
        %585 = vmatpush1.msra.mxu0 0.0
        %586 = vmatprep.subr.mxu0 0.0
        %587 = vmatpush1.msra.mxu0 0.0
        %588 = vmatprep.subr.mxu0 0.0
        %589 = vmatpush1.msra.mxu0 0.0
        %590 = vmatprep.subr.mxu0 0.0
        %591 = vmatpush1.msra.mxu0 0.0
        %592 = vmatprep.subr.mxu0 0.0
        %593 = vmatpush1.msra.mxu0 0.0
        %594 = vmatprep.subr.mxu0 0.0
        %595 = vmatpush1.msra.mxu0 0.0
        %596 = vmatprep.subr.mxu0 0.0
        %597 = vmatpush1.msra.mxu0 0.0
        %598 = vmatprep.subr.mxu0 0.0
        %599 = vmatpush1.msra.mxu0 0.0
        %600 = vmatprep.subr.mxu0 0.0
        %601 = vmatpush1.msra.mxu0 0.0
        %602 = vmatprep.subr.mxu0 0.0
        %603 = vmatpush1.msra.mxu0 %v566
        %604 = vmatprep.subr.mxu0 0.0
        %605 = vmatpush1.msra.mxu0 %v565
        %606 = vmatprep.subr.mxu0 0.0
        %607 = vmatpush1.msra.mxu0 %v564
        %608 = vmatprep.subr.mxu0 0.0
        %609 = vmatpush1.msra.mxu0 %v563
        %610 = vmatprep.subr.mxu0 0.0
        %611 = vmatpush2.msra.mxu0 0.0
        %612 = vmatprep.subr.mxu0 0.0
        %613 = vmatpush2.msra.mxu0 0.0
        %614 = vmatprep.subr.mxu0 0.0
        %615 = vmatpush2.msra.mxu0 0.0
        %616 = vmatprep.subr.mxu0 0.0
        %617 = vmatpush2.msra.mxu0 0.0
        %618 = vmatprep.subr.mxu0 0.0
        %619 = vmatpush2.msra.mxu0 0.0
        %620 = vmatprep.subr.mxu0 0.0
        %621 = vmatpush2.msra.mxu0 0.0
        %622 = vmatprep.subr.mxu0 0.0
        %623 = vmatpush2.msra.mxu0 0.0
        %624 = vmatprep.subr.mxu0 0.0
        %625 = vmatpush2.msra.mxu0 0.0
        %626 = vmatprep.subr.mxu0 0.0
        %627 = vmatpush2.msra.mxu0 0.0
        %628 = vmatprep.subr.mxu0 0.0
        %629 = vmatpush2.msra.mxu0 0.0
        %630 = vmatprep.subr.mxu0 0.0
        %631 = vmatpush2.msra.mxu0 0.0
        %632 = vmatprep.subr.mxu0 0.0
        %633 = vmatpush2.msra.mxu0 0.0
        %634 = vmatprep.subr.mxu0 0.0
        %635 = vmatpush2.msra.mxu0 0.0
        %636 = vmatprep.subr.mxu0 0.0
        %637 = vmatpush2.msra.mxu0 0.0
        %638 = vmatprep.subr.mxu0 0.0
        %639 = vmatpush2.msra.mxu0 0.0
        %640 = vmatprep.subr.mxu0 0.0
        %641 = vmatpush2.msra.mxu0 0.0
        %642 = vmatprep.mubr.f32.mxu0 0.0
        %643 = vmatmul.mubr.f32.gmra.mxu0 %v576
        %v644 = vpop.f32.mrf.mxu0
        %v645 = vadd.f32 %v572, %v644
        %v646 = vpop.f32.mrf.mxu0
        %647 = vdwg.mxu0
        %649 = vrot.lane.b32.xlu0 %v645, 120
        %v650 = vpop.permute.xlu0 %649
        %652 = vrot.lane.b32.xlu0 %v645, 112
        %v653 = vpop.permute.xlu0 %652
        %655 = vrot.lane.b32.xlu0 %v645, 104
        %v656 = vpop.permute.xlu0 %655
        %vm658 = vcmask 64512
        %659 = vst.msk [vmem:[%s547] sm:$0xff] %vm658, %v645
        %660 = vst.msk [vmem:[%s547 + $0x8] sm:$0xff] %vm658, %v650
        %661 = vst.msk [vmem:[%s547 + $0x10] sm:$0xff] %vm658, %v653
        %662 = vst.msk [vmem:[%s547 + $0x18] sm:$0xff] %vm658, %v656
        %v663 = vld [vmem:[%s482] sm:$0xff]
        %v664 = vld [vmem:[#allocation10] sm:$0xff]
        %v665 = vld [vmem:[#allocation10 + $0x8] sm:$0xff]
        %v666 = vld [vmem:[#allocation10 + $0x10] sm:$0xff]
        %v667 = vld [vmem:[#allocation10 + $0x18] sm:$0xff]
        %v668 = vld [vmem:[%s6] sm:$0x1]
        %v670 = vlaneseq
        %v671 = vshrl.u32 %v670, 7
        %v672 = vsub.s32 0, %v671
        %v673 = vrot.slane %v668, %v672
        %v676 = vsel %vm574, %v663, 0
        %678 = vmatprep.subr.mxu0 0.0
        %679 = vmatpush1.msra.mxu0 0.0
        %680 = vmatprep.subr.mxu0 0.0
        %681 = vmatpush1.msra.mxu0 0.0
        %682 = vmatprep.subr.mxu0 0.0
        %683 = vmatpush1.msra.mxu0 0.0
        %684 = vmatprep.subr.mxu0 0.0
        %685 = vmatpush1.msra.mxu0 0.0
        %686 = vmatprep.subr.mxu0 0.0
        %687 = vmatpush1.msra.mxu0 0.0
        %688 = vmatprep.subr.mxu0 0.0
        %689 = vmatpush1.msra.mxu0 0.0
        %690 = vmatprep.subr.mxu0 0.0
        %691 = vmatpush1.msra.mxu0 0.0
        %692 = vmatprep.subr.mxu0 0.0
        %693 = vmatpush1.msra.mxu0 0.0
        %694 = vmatprep.subr.mxu0 0.0
        %695 = vmatpush1.msra.mxu0 0.0
        %696 = vmatprep.subr.mxu0 0.0
        %697 = vmatpush1.msra.mxu0 0.0
        %698 = vmatprep.subr.mxu0 0.0
        %699 = vmatpush1.msra.mxu0 0.0
        %700 = vmatprep.subr.mxu0 0.0
        %701 = vmatpush1.msra.mxu0 0.0
        %702 = vmatprep.subr.mxu0 0.0
        %703 = vmatpush1.msra.mxu0 %v667
        %704 = vmatprep.subr.mxu0 0.0
        %705 = vmatpush1.msra.mxu0 %v666
        %706 = vmatprep.subr.mxu0 0.0
        %707 = vmatpush1.msra.mxu0 %v665
        %708 = vmatprep.subr.mxu0 0.0
        %709 = vmatpush1.msra.mxu0 %v664
        %710 = vmatprep.subr.mxu0 0.0
        %711 = vmatpush2.msra.mxu0 0.0
        %712 = vmatprep.subr.mxu0 0.0
        %713 = vmatpush2.msra.mxu0 0.0
        %714 = vmatprep.subr.mxu0 0.0
        %715 = vmatpush2.msra.mxu0 0.0
        %716 = vmatprep.subr.mxu0 0.0
        %717 = vmatpush2.msra.mxu0 0.0
        %718 = vmatprep.subr.mxu0 0.0
        %719 = vmatpush2.msra.mxu0 0.0
        %720 = vmatprep.subr.mxu0 0.0
        %721 = vmatpush2.msra.mxu0 0.0
        %722 = vmatprep.subr.mxu0 0.0
        %723 = vmatpush2.msra.mxu0 0.0
        %724 = vmatprep.subr.mxu0 0.0
        %725 = vmatpush2.msra.mxu0 0.0
        %726 = vmatprep.subr.mxu0 0.0
        %727 = vmatpush2.msra.mxu0 0.0
        %728 = vmatprep.subr.mxu0 0.0
        %729 = vmatpush2.msra.mxu0 0.0
        %730 = vmatprep.subr.mxu0 0.0
        %731 = vmatpush2.msra.mxu0 0.0
        %732 = vmatprep.subr.mxu0 0.0
        %733 = vmatpush2.msra.mxu0 0.0
        %734 = vmatprep.subr.mxu0 0.0
        %735 = vmatpush2.msra.mxu0 0.0
        %736 = vmatprep.subr.mxu0 0.0
        %737 = vmatpush2.msra.mxu0 0.0
        %738 = vmatprep.subr.mxu0 0.0
        %739 = vmatpush2.msra.mxu0 0.0
        %740 = vmatprep.subr.mxu0 0.0
        %741 = vmatpush2.msra.mxu0 0.0
        %742 = vmatprep.mubr.f32.mxu0 0.0
        %743 = vmatmul.mubr.f32.gmra.mxu0 %v676
        %v744 = vpop.f32.mrf.mxu0
        %v745 = vadd.f32 %v673, %v744
        %v746 = vpop.f32.mrf.mxu0
        %747 = vdwg.mxu0
        %749 = vrot.lane.b32.xlu0 %v745, 120
        %v750 = vpop.permute.xlu0 %749
        %752 = vrot.lane.b32.xlu0 %v745, 112
        %v753 = vpop.permute.xlu0 %752
        %755 = vrot.lane.b32.xlu0 %v745, 104
        %v756 = vpop.permute.xlu0 %755
        %758 = vst.msk [vmem:[%s554] sm:$0xff] %vm658, %v745
        %759 = vst.msk [vmem:[%s554 + $0x8] sm:$0xff] %vm658, %v750
        %760 = vst.msk [vmem:[%s554 + $0x10] sm:$0xff] %vm658, %v753
        %761 = vst.msk [vmem:[%s554 + $0x18] sm:$0xff] %vm658, %v756
        %v762 = vld [vmem:[%s491] sm:$0xff]
        %v763 = vld [vmem:[#allocation11] sm:$0xff]
        %v764 = vld [vmem:[#allocation11 + $0x8] sm:$0xff]
        %v765 = vld [vmem:[#allocation11 + $0x10] sm:$0xff]
        %v766 = vld [vmem:[#allocation11 + $0x18] sm:$0xff]
        %v767 = vld [vmem:[%s8] sm:$0x1]
        %v769 = vlaneseq
        %v770 = vshrl.u32 %v769, 7
        %v771 = vsub.s32 0, %v770
        %v772 = vrot.slane %v767, %v771
        %v775 = vsel %vm574, %v762, 0
        %777 = vmatprep.subr.mxu0 0.0
        %778 = vmatpush1.msra.mxu0 0.0
        %779 = vmatprep.subr.mxu0 0.0
        %780 = vmatpush1.msra.mxu0 0.0
        %781 = vmatprep.subr.mxu0 0.0
        %782 = vmatpush1.msra.mxu0 0.0
        %783 = vmatprep.subr.mxu0 0.0
        %784 = vmatpush1.msra.mxu0 0.0
        %785 = vmatprep.subr.mxu0 0.0
        %786 = vmatpush1.msra.mxu0 0.0
        %787 = vmatprep.subr.mxu0 0.0
        %788 = vmatpush1.msra.mxu0 0.0
        %789 = vmatprep.subr.mxu0 0.0
        %790 = vmatpush1.msra.mxu0 0.0
        %791 = vmatprep.subr.mxu0 0.0
        %792 = vmatpush1.msra.mxu0 0.0
        %793 = vmatprep.subr.mxu0 0.0
        %794 = vmatpush1.msra.mxu0 0.0
        %795 = vmatprep.subr.mxu0 0.0
        %796 = vmatpush1.msra.mxu0 0.0
        %797 = vmatprep.subr.mxu0 0.0
        %798 = vmatpush1.msra.mxu0 0.0
        %799 = vmatprep.subr.mxu0 0.0
        %800 = vmatpush1.msra.mxu0 0.0
        %801 = vmatprep.subr.mxu0 0.0
        %802 = vmatpush1.msra.mxu0 %v766
        %803 = vmatprep.subr.mxu0 0.0
        %804 = vmatpush1.msra.mxu0 %v765
        %805 = vmatprep.subr.mxu0 0.0
        %806 = vmatpush1.msra.mxu0 %v764
        %807 = vmatprep.subr.mxu0 0.0
        %808 = vmatpush1.msra.mxu0 %v763
        %809 = vmatprep.subr.mxu0 0.0
        %810 = vmatpush2.msra.mxu0 0.0
        %811 = vmatprep.subr.mxu0 0.0
        %812 = vmatpush2.msra.mxu0 0.0
        %813 = vmatprep.subr.mxu0 0.0
        %814 = vmatpush2.msra.mxu0 0.0
        %815 = vmatprep.subr.mxu0 0.0
        %816 = vmatpush2.msra.mxu0 0.0
        %817 = vmatprep.subr.mxu0 0.0
        %818 = vmatpush2.msra.mxu0 0.0
        %819 = vmatprep.subr.mxu0 0.0
        %820 = vmatpush2.msra.mxu0 0.0
        %821 = vmatprep.subr.mxu0 0.0
        %822 = vmatpush2.msra.mxu0 0.0
        %823 = vmatprep.subr.mxu0 0.0
        %824 = vmatpush2.msra.mxu0 0.0
        %825 = vmatprep.subr.mxu0 0.0
        %826 = vmatpush2.msra.mxu0 0.0
        %827 = vmatprep.subr.mxu0 0.0
        %828 = vmatpush2.msra.mxu0 0.0
        %829 = vmatprep.subr.mxu0 0.0
        %830 = vmatpush2.msra.mxu0 0.0
        %831 = vmatprep.subr.mxu0 0.0
        %832 = vmatpush2.msra.mxu0 0.0
        %833 = vmatprep.subr.mxu0 0.0
        %834 = vmatpush2.msra.mxu0 0.0
        %835 = vmatprep.subr.mxu0 0.0
        %836 = vmatpush2.msra.mxu0 0.0
        %837 = vmatprep.subr.mxu0 0.0
        %838 = vmatpush2.msra.mxu0 0.0
        %839 = vmatprep.subr.mxu0 0.0
        %840 = vmatpush2.msra.mxu0 0.0
        %841 = vmatprep.mubr.f32.mxu0 0.0
        %842 = vmatmul.mubr.f32.gmra.mxu0 %v775
        %v843 = vpop.f32.mrf.mxu0
        %v844 = vadd.f32 %v772, %v843
        %v845 = vpop.f32.mrf.mxu0
        %846 = vdwg.mxu0
        %848 = vrot.lane.b32.xlu0 %v844, 120
        %v849 = vpop.permute.xlu0 %848
        %851 = vrot.lane.b32.xlu0 %v844, 112
        %v852 = vpop.permute.xlu0 %851
        %854 = vrot.lane.b32.xlu0 %v844, 104
        %v855 = vpop.permute.xlu0 %854
        %857 = vst.msk [vmem:[%s561] sm:$0xff] %vm658, %v844
        %858 = vst.msk [vmem:[%s561 + $0x8] sm:$0xff] %vm658, %v849
        %859 = vst.msk [vmem:[%s561 + $0x10] sm:$0xff] %vm658, %v852
        %860 = vst.msk [vmem:[%s561 + $0x18] sm:$0xff] %vm658, %v855
        %s861 = sand.u32 %s269, 1
        %s862 = scalar_lea.sflag [#allocation4], %s861
        %s863 = sand.u32 %s269, 1
        %s864 = smul.addr %s863, 32
        %s865 = scalar_lea.vmem [#allocation13], %s864
        %s866 = sand.u32 %s37, 1
        %s867 = scalar_lea.sflag [#allocation15], %s866
        %s868 = sand.u32 %s297, 1
        %s869 = smul.addr %s868, 32
        %s870 = scalar_lea.vmem [#allocation14], %s869
        %s871 = sand.u32 %s37, 1
        %s872 = scalar_lea.sflag [#allocation15], %s871
        %s873 = sand.u32 %s325, 1
        %s874 = smul.addr %s873, 32
        %s875 = scalar_lea.vmem [#allocation16], %s874
        // Predicated region
        $region81: #{tpu_custom_call.1} parent=55 // pred_check
          %p876 = pneg %p279
        $region82: #{tpu_custom_call.1} parent=55 // pred_check_branch
          %878 = sbr.rel (%p876) target = $region84
        $region83: #{tpu_custom_call.1} parent=55 // pred_region
          %s880 = ssub.s32 512, 512
          %881 = vsyncadd %s862, %s880
          %s882 = smul.addr %s41, 4
          %s883 = sadd.s32 %s42, %s882
          %s884 = smul.addr %s883, 128
          %s885 = scalar_lea.hbm %s9, %s884
          %s886 = sshll.u32 %s865, 4
          %s887 = int_to_ptr.vmem [resolvable:$true] %s886
          %892 = dma.vmem_to_hbm [thread:$0]  %s887, 512, %s885, %s862, 128, 128, 8
        $region84: #{tpu_custom_call.1} parent=55 // pred_fallthru
          _
        // Predicated region
        $region85: #{tpu_custom_call.1} parent=55 // pred_check
          %p893 = pneg %p307
        $region86: #{tpu_custom_call.1} parent=55 // pred_check_branch
          %895 = sbr.rel (%p893) target = $region88
        $region87: #{tpu_custom_call.1} parent=55 // pred_region
          %s897 = ssub.s32 512, 512
          %898 = vsyncadd %s867, %s897
          %s899 = smul.addr %s41, 4
          %s900 = sadd.s32 %s42, %s899
          %s901 = smul.addr %s900, 128
          %s902 = scalar_lea.hbm %s10, %s901
          %s903 = sshll.u32 %s870, 4
          %s904 = int_to_ptr.vmem [resolvable:$true] %s903
          %909 = dma.vmem_to_hbm [thread:$0]  %s904, 512, %s902, %s867, 128, 128, 8
        $region88: #{tpu_custom_call.1} parent=55 // pred_fallthru
          _
        // Predicated region
        $region89: #{tpu_custom_call.1} parent=55 // pred_check
          %p910 = pneg %p335
        $region90: #{tpu_custom_call.1} parent=55 // pred_check_branch
          %912 = sbr.rel (%p910) target = $region92
        $region91: #{tpu_custom_call.1} parent=55 // pred_region
          %s914 = ssub.s32 512, 512
          %915 = vsyncadd %s872, %s914
          %s916 = smul.addr %s41, 4
          %s917 = sadd.s32 %s42, %s916
          %s918 = smul.addr %s917, 128
          %s919 = scalar_lea.hbm %s11, %s918
          %s920 = sshll.u32 %s875, 4
          %s921 = int_to_ptr.vmem [resolvable:$true] %s920
          %926 = dma.vmem_to_hbm [thread:$0]  %s921, 512, %s919, %s872, 128, 128, 8
        $region92: #{tpu_custom_call.1} parent=55 // pred_fallthru
          _
      $region56: #{tpu_custom_call.1} parent=5 // pred_fallthru
        _
      %p927 = scmp.le.s32.totalorder 2, %s32
      // Predicated region
      $region93: #{tpu_custom_call.1} parent=5 // pred_check
        %p928 = pneg %p927
      $region94: #{tpu_custom_call.1} parent=5 // pred_check_branch
        %930 = sbr.rel (%p928) target = $region96
      $region95: #{tpu_custom_call.1} parent=5 // pred_region
        %s931 = ssub.s32 %s32, 2
        // Predicated region
        $region97: #{tpu_custom_call.1} parent=95 // pred_check
          %p932 = pneg %p285
        $region98: #{tpu_custom_call.1} parent=95 // pred_check_branch
          %934 = sbr.rel (%p932) target = $region100
        $region99: #{tpu_custom_call.1} parent=95 // pred_region
          %s935 = sand.u32 %s270, 1
          %s936 = scalar_lea.sflag [#allocation4], %s935
          %s937 = sand.u32 %s270, 1
          %s938 = smul.addr %s937, 32
          %s939 = scalar_lea.vmem [#allocation13], %s938
          %940 = dma.done %s936, 512
        $region100: #{tpu_custom_call.1} parent=95 // pred_fallthru
          _
        // Predicated region
        $region101: #{tpu_custom_call.1} parent=95 // pred_check
          %p941 = pneg %p313
        $region102: #{tpu_custom_call.1} parent=95 // pred_check_branch
          %943 = sbr.rel (%p941) target = $region104
        $region103: #{tpu_custom_call.1} parent=95 // pred_region
          %s944 = sand.u32 %s38, 1
          %s945 = scalar_lea.sflag [#allocation15], %s944
          %s946 = sand.u32 %s298, 1
          %s947 = smul.addr %s946, 32
          %s948 = scalar_lea.vmem [#allocation14], %s947
          %949 = dma.done %s945, 512
        $region104: #{tpu_custom_call.1} parent=95 // pred_fallthru
          _
        // Predicated region
        $region105: #{tpu_custom_call.1} parent=95 // pred_check
          %p950 = pneg %p341
        $region106: #{tpu_custom_call.1} parent=95 // pred_check_branch
          %952 = sbr.rel (%p950) target = $region108
        $region107: #{tpu_custom_call.1} parent=95 // pred_region
          %s953 = sand.u32 %s38, 1
          %s954 = scalar_lea.sflag [#allocation15], %s953
          %s955 = sand.u32 %s326, 1
          %s956 = smul.addr %s955, 32
          %s957 = scalar_lea.vmem [#allocation16], %s956
          %958 = dma.done %s954, 512
        $region108: #{tpu_custom_call.1} parent=95 // pred_fallthru
          _
      $region96: #{tpu_custom_call.1} parent=5 // pred_fallthru
        _
    $region6: #{tpu_custom_call.1} parent=1 // loop_footer
      %s36 = sadd.s32 1, %s32
    $region7: #{tpu_custom_call.1} parent=1 // loop_footer_branch
      %31 = sbr.rel target = $region3
    $region8: #{tpu_custom_call.1} parent=1 // loop_exit
      _
    %959 = vsyncpa [#allocation3], 1
    %s960 = scalar_lea.sflag [#allocation3], 1
    %961 = vsyncpa %s960, 1
    %962 = vsyncpa [#allocation6], 1
    %s963 = scalar_lea.sflag [#allocation6], 1
    %964 = vsyncpa %s963, 1
    %965 = vsyncpa [#allocation9], 1
    %966 = vsyncpa [#allocation12], 1
    %967 = vsyncpa [#allocation4], 1
    %s968 = scalar_lea.sflag [#allocation4], 1
    %969 = vsyncpa %s968, 1
    %970 = vsyncpa [#allocation15], 1
    %s971 = scalar_lea.sflag [#allocation15], 1
    %972 = vsyncpa %s971, 1

</llo_original>
